<compile_context>
chip_gen: v5e
topology: v5e:2x2
jax: 0.10.0
libtpu: 0.0.40
codegen_flags: <defaults>
</compile_context>

<pallas_src>
import math

import jax
import jax.numpy as jnp
from jax import lax
from jax.experimental import pallas as pl
from jax.experimental.pallas import tpu as pltpu


# ----------------------------------------------------------------------------
# helpers
# ----------------------------------------------------------------------------
def _round_up(n, m):
    return ((n + m - 1) // m) * m


def _pick_lane_tile(n, cap=512):
    """Lane-dim tile: multiple of 128, at most `cap`, covering n when small."""
    return min(cap, _round_up(n, 128))


def _pick_sublane_tile(n, cap=128):
    """Sublane-dim tile: either the full extent or a multiple of 8 dividing n."""
    if n <= cap:
        return n
    for c in range(cap, 7, -8):
        if n % c == 0:
            return c
    return n


# ----------------------------------------------------------------------------
# Pallas kernel 1: Conv3d as a tiled bf16 im2col matmul (output lane-dense in S)
# ----------------------------------------------------------------------------
def _conv_matmul_kernel(w_ref, p_ref, o_ref, acc_ref):
    # grid = (B, Cout_tiles, S_tiles, K_tiles); K is the innermost reduction axis
    @pl.when(pl.program_id(3) == 0)
    def _init():
        acc_ref[...] = jnp.zeros_like(acc_ref)

    acc_ref[...] += jnp.dot(w_ref[...], p_ref[0],
                            preferred_element_type=jnp.float32)

    @pl.when(pl.program_id(3) == pl.num_programs(3) - 1)
    def _store():
        o_ref[0] = acc_ref[...]


def conv3d_votes(x, weight, stride, tile_s):
    """Conv3d (padding=0) emitted directly in routing layout.

    x: (B, Cin, D, H, W) f32, weight: (Cout, Cin, k, k, k) f32.
    Returns (out, (Do, Ho, Wo)) where out is (B, Cout, S_pad) f32 with the
    flattened output spatial dim on the lane axis, zero-padded to S_pad.
    """
    B, Cin, D, H, W = x.shape
    Cout, _, k, _, _ = weight.shape
    Do = (D - k) // stride + 1
    Ho = (H - k) // stride + 1
    Wo = (W - k) // stride + 1
    S = Do * Ho * Wo
    K = Cin * k * k * k

    S_pad = _round_up(S, tile_s)
    tile_k = _pick_lane_tile(K, 512)
    K_pad = _round_up(K, tile_k)
    tile_co = _pick_sublane_tile(Cout, 128)

    # im2col in (B, K, S) layout; K ordering is Cin-major / (dz,dy,dx)-minor,
    # matching torch's weight.reshape(Cout, Cin*k^3).
    # TODO(synk): the k^3 shifted-window gather is still materialized by XLA
    #             (k^3-x HBM blowup, halved by bf16); fully fusing it into the
    #             kernel DMA needs Element-offset BlockSpecs + in-kernel
    #             window flattening, left out for lowering robustness.
    xb = x.astype(jnp.bfloat16)
    cols = []
    for dz in range(k):
        for dy in range(k):
            for dx in range(k):
                cols.append(xb[:, :,
                               dz:dz + stride * Do:stride,
                               dy:dy + stride * Ho:stride,
                               dx:dx + stride * Wo:stride])
    patches = jnp.stack(cols, axis=2).reshape(B, K, S)       # free reshape
    patches = jnp.pad(patches, ((0, 0), (0, K_pad - K), (0, S_pad - S)))

    w_mat = weight.reshape(Cout, K).astype(jnp.bfloat16)
    w_mat = jnp.pad(w_mat, ((0, 0), (0, K_pad - K)))

    grid = (B, Cout // tile_co, S_pad // tile_s, K_pad // tile_k)

    out = pl.pallas_call(
        _conv_matmul_kernel,
        out_shape=jax.ShapeDtypeStruct((B, Cout, S_pad), jnp.float32),
        grid=grid,
        in_specs=[
            pl.BlockSpec((tile_co, tile_k), lambda b, i, j, kk: (i, kk)),
            pl.BlockSpec((1, tile_k, tile_s), lambda b, i, j, kk: (b, kk, j)),
        ],
        out_specs=pl.BlockSpec((1, tile_co, tile_s),
                               lambda b, i, j, kk: (b, i, j)),
        scratch_shapes=[pltpu.VMEM((tile_co, tile_s), jnp.float32)],
        compiler_params=pltpu.CompilerParams(
            dimension_semantics=("parallel", "parallel", "parallel",
                                 "arbitrary"),
            vmem_limit_bytes=32 * 1024 * 1024),
        cost_estimate=pl.CostEstimate(
            flops=2 * B * Cout * S_pad * K_pad,
            transcendentals=0,
            bytes_accessed=(Cout * K_pad * 2 + B * K_pad * S_pad * 2
                            + B * Cout * S_pad * 4)),
    )(w_mat, patches)
    return out, (Do, Ho, Wo)


# ----------------------------------------------------------------------------
# Pallas kernel 2: sigmoid dynamic routing (update_routing, num_dims=7)
# ----------------------------------------------------------------------------
_SQUASH_EPS = 1e-7


# TODO(synk): h.squash is an external helper; the standard "safe" capsule
#             squash (|s|^2/(1+|s|^2)) * s / sqrt(|s|^2 + eps) is assumed.
def _squash(x, axis):
    sq = jnp.sum(x * x, axis=axis, keepdims=True)
    return (sq / (1.0 + sq)) * x * lax.rsqrt(sq + _SQUASH_EPS)


def make_routing_kernel(num_routing, final_squash):
    r0 = 1.0 / (1.0 + math.exp(-1.0))   # sigmoid(1): iteration-0 route constant

    def kernel(votes_ref, bias_ref, out_ref):
        votes = votes_ref[0]             # (IC, NC, A, tS)  f32
        bias = bias_ref[...]             # (NC, A, 1) -> broadcasts over lanes
        # routing iteration 0 folded: logits == 1 => route is a constant
        preact = r0 * jnp.sum(votes, axis=0) + bias          # (NC, A, tS)
        act = _squash(preact, axis=1)
        logits = None
        for _ in range(1, num_routing):
            dist = jnp.sum(votes * act[None], axis=2, keepdims=True)  # (IC,NC,1,tS)
            logits = (1.0 + dist) if logits is None else (logits + dist)
            route = jax.nn.sigmoid(logits)                    # (IC, NC, 1, tS)
            preact = jnp.sum(route * votes, axis=0) + bias    # (NC, A, tS)
            act = _squash(preact, axis=1)
        out_ref[0] = act if final_squash else preact

    return kernel


# ----------------------------------------------------------------------------
# Module wrapper
# ----------------------------------------------------------------------------
class ConvCapsuleLayer3D:
    def __init__(self, key, kernel_size, input_num_capsule, input_num_atoms,
                 num_capsule, num_atoms, strides=1, padding=0, routings=3,
                 final_squash=True, sigmoid_routing=True):
        assert padding == 0, "only padding=0 implemented"
        assert sigmoid_routing, "only sigmoid routing implemented"
        self.kernel_size = kernel_size
        self.input_num_capsule = input_num_capsule
        self.input_num_atoms = input_num_atoms
        self.num_capsule = num_capsule
        self.num_atoms = num_atoms
        self.strides = strides
        self.routings = routings
        self.final_squash = final_squash

        in_channels = input_num_capsule * input_num_atoms
        out_channels = input_num_capsule * num_capsule * num_atoms
        fan_in = in_channels * kernel_size ** 3
        std = (2.0 / fan_in) ** 0.5                 # kaiming_normal_, fan_in
        self.weight = std * jax.random.normal(
            key, (out_channels, in_channels,
                  kernel_size, kernel_size, kernel_size), jnp.float32)
        self.b = jnp.full((num_capsule, num_atoms, 1), 0.1, jnp.float32)

    def __call__(self, x):
        B, IC, IA, D, H, W = x.shape
        assert IC == self.input_num_capsule and IA == self.input_num_atoms
        NC, A = self.num_capsule, self.num_atoms
        k, st, R = self.kernel_size, self.strides, self.routings

        Do = (D - k) // st + 1
        Ho = (H - k) // st + 1
        Wo = (W - k) // st + 1
        S = Do * Ho * Wo
        tile_s = _pick_lane_tile(S, 512)

        x_r = x.reshape(B, IC * IA, D, H, W)
        conv, _ = conv3d_votes(x_r, self.weight, st, tile_s)  # (B, Cout, S_pad)
        S_pad = conv.shape[-1]

        votes = conv.reshape(B, IC, NC, A, S_pad)             # free reshape

        kernel = make_routing_kernel(R, self.final_squash)
        act = pl.pallas_call(
            kernel,
            out_shape=jax.ShapeDtypeStruct((B, NC, A, S_pad), jnp.float32),
            grid=(B, S_pad // tile_s),
            in_specs=[
                pl.BlockSpec((1, IC, NC, A, tile_s),
                             lambda b, j: (b, 0, 0, 0, j)),
                pl.BlockSpec((NC, A, 1), lambda b, j: (0, 0, 0)),
            ],
            out_specs=pl.BlockSpec((1, NC, A, tile_s),
                                   lambda b, j: (b, 0, 0, j)),
            compiler_params=pltpu.CompilerParams(
                dimension_semantics=("parallel", "parallel"),
                vmem_limit_bytes=32 * 1024 * 1024),
            cost_estimate=pl.CostEstimate(
                flops=6 * R * B * IC * NC * A * S_pad,
                transcendentals=(R - 1) * B * IC * NC * S_pad
                                + R * B * NC * S_pad,
                bytes_accessed=votes.size * 4 + B * NC * A * S_pad * 4),
        )(votes, self.b)

        # strip spatial padding, restore (B, num_capsule, num_atoms, Do, Ho, Wo)
        return act[..., :S].reshape(B, NC, A, Do, Ho, Wo)


# ----------------------------------------------------------------------------
# Pure-JAX reference (f32) for a sanity check
# ----------------------------------------------------------------------------
def reference_forward(x, weight, b, strides, routings, NC, A, final_squash=True):
    B, IC, IA, D, H, W = x.shape
    x_r = x.reshape(B, IC * IA, D, H, W)
    conv = lax.conv_general_dilated(
        x_r, weight, window_strides=(strides,) * 3, padding='VALID',
        dimension_numbers=('NCDHW', 'OIDHW', 'NCDHW'))
    _, _, Do, Ho, Wo = conv.shape
    votes = conv.reshape(B, IC, NC, A, Do, Ho, Wo)
    biases = b[:, :, None, None, None]
    logits = jnp.ones((B, IC, NC, 1, Do, Ho, Wo), jnp.float32)
    act = None
    for i in range(routings):
        route = jax.nn.sigmoid(logits)
        preact = jnp.sum(route * votes, axis=1) + biases[None]
        act = _squash(preact, axis=2)
        if i == routings - 1:
            if not final_squash:
                act = preact
        else:
            dist = jnp.sum(votes * act[:, None], axis=3, keepdims=True)
            logits = logits + dist
    return act


if __name__ == "__main__":
    # Small, forward-consistent shapes.
    B, IC, IA, NC, A = 2, 2, 4, 4, 8
    D = H = W = 8
    k, stride, routings = 3, 1, 3

    key = jax.random.PRNGKey(0)
    k_in, k_w = jax.random.split(key)
    x = jax.random.normal(k_in, (B, IC, IA, D, H, W), jnp.float32)

    layer = ConvCapsuleLayer3D(k_w, kernel_size=k, input_num_capsule=IC,
                               input_num_atoms=IA, num_capsule=NC,
                               num_atoms=A, strides=stride, padding=0,
                               routings=routings)

    out = jax.block_until_ready(jax.jit(layer.__call__)(x))
    ref = jax.block_until_ready(
        reference_forward(x, layer.weight, layer.b[:, :, 0], stride,
                          routings, NC, A))

    assert out.shape == (B, NC, A, D - k + 1, H - k + 1, W - k + 1), out.shape
    # bf16 MXU operands (f32 accumulation) vs f32 reference -> 5e-2 tolerance.
    max_err = float(jnp.max(jnp.abs(out - ref)))
    assert jnp.allclose(out, ref, rtol=5e-2, atol=5e-2), max_err
    print("KERNEL_OK")
</pallas_src>

<mosaic_0001>
module attributes {stable_mosaic.version = 11 : i64} {
  func.func @_conv_matmul_kernel(%arg0: i32, %arg1: i32, %arg2: i32, %arg3: i32, %arg4: memref<64x256xbf16, #tpu.memory_space<vmem>>, %arg5: memref<1x256x256xbf16, #tpu.memory_space<vmem>>, %arg6: memref<1x64x256xf32, #tpu.memory_space<vmem>>, %arg7: memref<64x256xf32, #tpu.memory_space<vmem>>) attributes {dimension_semantics = [#tpu.dimension_semantics<parallel>, #tpu.dimension_semantics<parallel>, #tpu.dimension_semantics<parallel>, #tpu.dimension_semantics<arbitrary>], iteration_bounds = array<i64: 2, 1, 1, 1>, scalar_prefetch = 0 : i64, scratch_operands = 1 : i64, tpu.core_type = #tpu.core_type<tc>, window_params = [{transform_indices = @transform_0, window_bounds = array<i64: 64, 256>}, {transform_indices = @transform_1, window_bounds = array<i64: 1, 256, 256>}, {transform_indices = @transform_2, window_bounds = array<i64: 1, 64, 256>}]} {
    %c0_i32 = arith.constant 0 : i32
    %0 = arith.cmpi eq, %arg3, %c0_i32 : i32
    %1 = arith.extui %0 : i1 to i32
    %c0_i32_0 = arith.constant 0 : i32
    %2 = arith.cmpi ne, %1, %c0_i32_0 : i32
    scf.if %2 {
      %cst_11 = arith.constant 0.000000e+00 : f32
      %13 = vector.broadcast %cst_11 : f32 to vector<64x256xf32>
      %c0_12 = arith.constant 0 : index
      %c0_13 = arith.constant 0 : index
      %14 = vector.load %arg7[%c0_12, %c0_13] : memref<64x256xf32, #tpu.memory_space<vmem>>, vector<64x256xf32>
      tpu.vector_store %arg7[%c0_12, %c0_13], %13 {strides = array<i32>} : memref<64x256xf32, #tpu.memory_space<vmem>>, vector<64x256xf32>,
    } else {
    }
    %c0 = arith.constant 0 : index
    %c0_1 = arith.constant 0 : index
    %3 = vector.load %arg7[%c0, %c0_1] : memref<64x256xf32, #tpu.memory_space<vmem>>, vector<64x256xf32>
    %c0_2 = arith.constant 0 : index
    %c0_3 = arith.constant 0 : index
    %4 = vector.load %arg4[%c0_2, %c0_3] : memref<64x256xbf16, #tpu.memory_space<vmem>>, vector<64x256xbf16>
    %c0_4 = arith.constant 0 : index
    %c0_5 = arith.constant 0 : index
    %c0_6 = arith.constant 0 : index
    %5 = vector.load %arg5[%c0_4, %c0_5, %c0_6] : memref<1x256x256xbf16, #tpu.memory_space<vmem>>, vector<1x256x256xbf16>
    %6 = vector.shape_cast %5 : vector<1x256x256xbf16> to vector<256x256xbf16>
    %cst = arith.constant dense<0.000000e+00> : vector<64x256xf32>
    %7 = tpu.matmul %4, %6, %cst {dimension_numbers = #tpu.dot_dimension_numbers<[1], [0], [0], [1], [0, 0, 1, 1], [], []>} : vector<64x256xbf16>, vector<256x256xbf16>, vector<64x256xf32> -> vector<64x256xf32>
    %8 = arith.addf %3, %7 : vector<64x256xf32>
    %c0_7 = arith.constant 0 : index
    %c0_8 = arith.constant 0 : index
    %9 = vector.load %arg7[%c0_7, %c0_8] : memref<64x256xf32, #tpu.memory_space<vmem>>, vector<64x256xf32>
    tpu.vector_store %arg7[%c0_7, %c0_8], %8 {strides = array<i32>} : memref<64x256xf32, #tpu.memory_space<vmem>>, vector<64x256xf32>,
    %c0_i32_9 = arith.constant 0 : i32
    %10 = arith.cmpi eq, %arg3, %c0_i32_9 : i32
    %11 = arith.extui %10 : i1 to i32
    %c0_i32_10 = arith.constant 0 : i32
    %12 = arith.cmpi ne, %11, %c0_i32_10 : i32
    scf.if %12 {
      %c0_11 = arith.constant 0 : index
      %c0_12 = arith.constant 0 : index
      %13 = vector.load %arg7[%c0_11, %c0_12] : memref<64x256xf32, #tpu.memory_space<vmem>>, vector<64x256xf32>
      %c0_13 = arith.constant 0 : index
      %c0_14 = arith.constant 0 : index
      %c0_15 = arith.constant 0 : index
      %14 = vector.load %arg6[%c0_13, %c0_14, %c0_15] : memref<1x64x256xf32, #tpu.memory_space<vmem>>, vector<1x64x256xf32>
      %15 = vector.shape_cast %14 : vector<1x64x256xf32> to vector<64x256xf32>
      %16 = vector.shape_cast %13 : vector<64x256xf32> to vector<1x64x256xf32>
      tpu.vector_store %arg6[%c0_13, %c0_14, %c0_15], %16 {strides = array<i32>} : memref<1x64x256xf32, #tpu.memory_space<vmem>>, vector<1x64x256xf32>,
    } else {
    }
    return
  }
  func.func @transform_0(%arg0: i32, %arg1: i32, %arg2: i32, %arg3: i32) -> (i32, i32) {
    %c0_i32 = arith.constant 0 : i32
    return %arg1, %arg3 : i32, i32
  }
  func.func @transform_1(%arg0: i32, %arg1: i32, %arg2: i32, %arg3: i32) -> (i32, i32, i32) {
    %c0_i32 = arith.constant 0 : i32
    return %arg0, %arg3, %arg2 : i32, i32, i32
  }
  func.func @transform_2(%arg0: i32, %arg1: i32, %arg2: i32, %arg3: i32) -> (i32, i32, i32) {
    %c0_i32 = arith.constant 0 : i32
    return %arg0, %arg1, %arg2 : i32, i32, i32
  }
}

module attributes {stable_mosaic.version = 11 : i64} {
  func.func @kernel(%arg0: i32, %arg1: i32, %arg2: memref<1x2x4x8x256xf32, #tpu.memory_space<vmem>>, %arg3: memref<4x8x1xf32, #tpu.memory_space<vmem>>, %arg4: memref<1x4x8x256xf32, #tpu.memory_space<vmem>>) attributes {dimension_semantics = [#tpu.dimension_semantics<parallel>, #tpu.dimension_semantics<parallel>], iteration_bounds = array<i64: 2, 1>, scalar_prefetch = 0 : i64, scratch_operands = 0 : i64, tpu.core_type = #tpu.core_type<tc>, window_params = [{transform_indices = @transform_0, window_bounds = array<i64: 1, 2, 4, 8, 256>}, {pipeline_mode = #tpu.pipeline_mode<synchronous>, transform_indices = @transform_1, window_bounds = array<i64: 4, 8, 1>}, {transform_indices = @transform_2, window_bounds = array<i64: 1, 4, 8, 256>}]} {
    %c0 = arith.constant 0 : index
    %c0_0 = arith.constant 0 : index
    %c0_1 = arith.constant 0 : index
    %c0_2 = arith.constant 0 : index
    %c0_3 = arith.constant 0 : index
    %0 = vector.load %arg2[%c0, %c0_0, %c0_1, %c0_2, %c0_3] : memref<1x2x4x8x256xf32, #tpu.memory_space<vmem>>, vector<1x2x4x8x256xf32>
    %1 = vector.shape_cast %0 : vector<1x2x4x8x256xf32> to vector<2x4x8x256xf32>
    %c0_4 = arith.constant 0 : index
    %c0_5 = arith.constant 0 : index
    %c0_6 = arith.constant 0 : index
    %2 = vector.load %arg3[%c0_4, %c0_5, %c0_6] : memref<4x8x1xf32, #tpu.memory_space<vmem>>, vector<4x8x1xf32>
    %cst = arith.constant dense<0.000000e+00> : vector<4x8x256xf32>
    %3 = vector.multi_reduction <add>, %1, %cst [0] : vector<2x4x8x256xf32> to vector<4x8x256xf32>
    %cst_7 = arith.constant 0.731058597 : f32
    %4 = vector.broadcast %cst_7 : f32 to vector<4x8x256xf32>
    %5 = arith.mulf %4, %3 : vector<4x8x256xf32>
    %6 = vector.broadcast %2 : vector<4x8x1xf32> to vector<4x8x256xf32>
    %7 = arith.addf %5, %6 : vector<4x8x256xf32>
    %8 = arith.mulf %7, %7 : vector<4x8x256xf32>
    %cst_8 = arith.constant dense<0.000000e+00> : vector<4x256xf32>
    %9 = vector.multi_reduction <add>, %8, %cst_8 [1] : vector<4x8x256xf32> to vector<4x256xf32>
    %10 = vector.shape_cast %9 : vector<4x256xf32> to vector<4x1x256xf32>
    %cst_9 = arith.constant 1.000000e+00 : f32
    %11 = vector.broadcast %cst_9 : f32 to vector<4x1x256xf32>
    %12 = arith.addf %11, %10 : vector<4x1x256xf32>
    %13 = arith.divf %10, %12 : vector<4x1x256xf32>
    %14 = vector.broadcast %13 : vector<4x1x256xf32> to vector<4x8x256xf32>
    %15 = arith.mulf %14, %7 : vector<4x8x256xf32>
    %cst_10 = arith.constant 1.000000e-07 : f32
    %16 = vector.broadcast %cst_10 : f32 to vector<4x1x256xf32>
    %17 = arith.addf %10, %16 : vector<4x1x256xf32>
    %18 = math.rsqrt %17 : vector<4x1x256xf32>
    %19 = vector.broadcast %18 : vector<4x1x256xf32> to vector<4x8x256xf32>
    %20 = arith.mulf %15, %19 : vector<4x8x256xf32>
    %21 = vector.shape_cast %20 : vector<4x8x256xf32> to vector<1x4x8x256xf32>
    %22 = vector.broadcast %21 : vector<1x4x8x256xf32> to vector<2x4x8x256xf32>
    %23 = arith.mulf %1, %22 : vector<2x4x8x256xf32>
    %cst_11 = arith.constant dense<0.000000e+00> : vector<2x4x256xf32>
    %24 = vector.multi_reduction <add>, %23, %cst_11 [2] : vector<2x4x8x256xf32> to vector<2x4x256xf32>
    %25 = vector.shape_cast %24 : vector<2x4x256xf32> to vector<2x4x1x256xf32>
    %cst_12 = arith.constant 1.000000e+00 : f32
    %26 = vector.broadcast %cst_12 : f32 to vector<2x4x1x256xf32>
    %27 = arith.addf %26, %25 : vector<2x4x1x256xf32>
    %28 = arith.negf %27 : vector<2x4x1x256xf32>
    %29 = math.exp %28 : vector<2x4x1x256xf32>
    %cst_13 = arith.constant 1.000000e+00 : f32
    %30 = vector.broadcast %cst_13 : f32 to vector<2x4x1x256xf32>
    %31 = arith.addf %30, %29 : vector<2x4x1x256xf32>
    %32 = arith.divf %30, %31 : vector<2x4x1x256xf32>
    %33 = vector.broadcast %32 : vector<2x4x1x256xf32> to vector<2x4x8x256xf32>
    %34 = arith.mulf %33, %1 : vector<2x4x8x256xf32>
    %cst_14 = arith.constant dense<0.000000e+00> : vector<4x8x256xf32>
    %35 = vector.multi_reduction <add>, %34, %cst_14 [0] : vector<2x4x8x256xf32> to vector<4x8x256xf32>
    %36 = vector.broadcast %2 : vector<4x8x1xf32> to vector<4x8x256xf32>
    %37 = arith.addf %35, %36 : vector<4x8x256xf32>
    %38 = arith.mulf %37, %37 : vector<4x8x256xf32>
    %cst_15 = arith.constant dense<0.000000e+00> : vector<4x256xf32>
    %39 = vector.multi_reduction <add>, %38, %cst_15 [1] : vector<4x8x256xf32> to vector<4x256xf32>
    %40 = vector.shape_cast %39 : vector<4x256xf32> to vector<4x1x256xf32>
    %cst_16 = arith.constant 1.000000e+00 : f32
    %41 = vector.broadcast %cst_16 : f32 to vector<4x1x256xf32>
    %42 = arith.addf %41, %40 : vector<4x1x256xf32>
    %43 = arith.divf %40, %42 : vector<4x1x256xf32>
    %44 = vector.broadcast %43 : vector<4x1x256xf32> to vector<4x8x256xf32>
    %45 = arith.mulf %44, %37 : vector<4x8x256xf32>
    %cst_17 = arith.constant 1.000000e-07 : f32
    %46 = vector.broadcast %cst_17 : f32 to vector<4x1x256xf32>
    %47 = arith.addf %40, %46 : vector<4x1x256xf32>
    %48 = math.rsqrt %47 : vector<4x1x256xf32>
    %49 = vector.broadcast %48 : vector<4x1x256xf32> to vector<4x8x256xf32>
    %50 = arith.mulf %45, %49 : vector<4x8x256xf32>
    %51 = vector.shape_cast %50 : vector<4x8x256xf32> to vector<1x4x8x256xf32>
    %52 = vector.broadcast %51 : vector<1x4x8x256xf32> to vector<2x4x8x256xf32>
    %53 = arith.mulf %1, %52 : vector<2x4x8x256xf32>
    %cst_18 = arith.constant dense<0.000000e+00> : vector<2x4x256xf32>
    %54 = vector.multi_reduction <add>, %53, %cst_18 [2] : vector<2x4x8x256xf32> to vector<2x4x256xf32>
    %55 = vector.shape_cast %54 : vector<2x4x256xf32> to vector<2x4x1x256xf32>
    %56 = arith.addf %27, %55 : vector<2x4x1x256xf32>
    %57 = arith.negf %56 : vector<2x4x1x256xf32>
    %58 = math.exp %57 : vector<2x4x1x256xf32>
    %cst_19 = arith.constant 1.000000e+00 : f32
    %59 = vector.broadcast %cst_19 : f32 to vector<2x4x1x256xf32>
    %60 = arith.addf %59, %58 : vector<2x4x1x256xf32>
    %61 = arith.divf %59, %60 : vector<2x4x1x256xf32>
    %62 = vector.broadcast %61 : vector<2x4x1x256xf32> to vector<2x4x8x256xf32>
    %63 = arith.mulf %62, %1 : vector<2x4x8x256xf32>
    %cst_20 = arith.constant dense<0.000000e+00> : vector<4x8x256xf32>
    %64 = vector.multi_reduction <add>, %63, %cst_20 [0] : vector<2x4x8x256xf32> to vector<4x8x256xf32>
    %65 = vector.broadcast %2 : vector<4x8x1xf32> to vector<4x8x256xf32>
    %66 = arith.addf %64, %65 : vector<4x8x256xf32>
    %67 = arith.mulf %66, %66 : vector<4x8x256xf32>
    %cst_21 = arith.constant dense<0.000000e+00> : vector<4x256xf32>
    %68 = vector.multi_reduction <add>, %67, %cst_21 [1] : vector<4x8x256xf32> to vector<4x256xf32>
    %69 = vector.shape_cast %68 : vector<4x256xf32> to vector<4x1x256xf32>
    %cst_22 = arith.constant 1.000000e+00 : f32
    %70 = vector.broadcast %cst_22 : f32 to vector<4x1x256xf32>
    %71 = arith.addf %70, %69 : vector<4x1x256xf32>
    %72 = arith.divf %69, %71 : vector<4x1x256xf32>
    %73 = vector.broadcast %72 : vector<4x1x256xf32> to vector<4x8x256xf32>
    %74 = arith.mulf %73, %66 : vector<4x8x256xf32>
    %cst_23 = arith.constant 1.000000e-07 : f32
    %75 = vector.broadcast %cst_23 : f32 to vector<4x1x256xf32>
    %76 = arith.addf %69, %75 : vector<4x1x256xf32>
    %77 = math.rsqrt %76 : vector<4x1x256xf32>
    %78 = vector.broadcast %77 : vector<4x1x256xf32> to vector<4x8x256xf32>
    %79 = arith.mulf %74, %78 : vector<4x8x256xf32>
    %c0_24 = arith.constant 0 : index
    %c0_25 = arith.constant 0 : index
    %c0_26 = arith.constant 0 : index
    %c0_27 = arith.constant 0 : index
    %80 = vector.load %arg4[%c0_24, %c0_25, %c0_26, %c0_27] : memref<1x4x8x256xf32, #tpu.memory_space<vmem>>, vector<1x4x8x256xf32>
    %81 = vector.shape_cast %80 : vector<1x4x8x256xf32> to vector<4x8x256xf32>
    %82 = vector.shape_cast %79 : vector<4x8x256xf32> to vector<1x4x8x256xf32>
    tpu.vector_store %arg4[%c0_24, %c0_25, %c0_26, %c0_27], %82 {strides = array<i32>} : memref<1x4x8x256xf32, #tpu.memory_space<vmem>>, vector<1x4x8x256xf32>,
    return
  }
  func.func @transform_0(%arg0: i32, %arg1: i32) -> (i32, i32, i32, i32, i32) {
    %c0_i32 = arith.constant 0 : i32
    %c0_i32_0 = arith.constant 0 : i32
    %c0_i32_1 = arith.constant 0 : i32
    %c0_i32_2 = arith.constant 0 : i32
    return %arg0, %c0_i32, %c0_i32_0, %c0_i32_1, %arg1 : i32, i32, i32, i32, i32
  }
  func.func @transform_1(%arg0: i32, %arg1: i32) -> (i32, i32, i32) {
    %c0_i32 = arith.constant 0 : i32
    %c0_i32_0 = arith.constant 0 : i32
    %c0_i32_1 = arith.constant 0 : i32
    %c0_i32_2 = arith.constant 0 : i32
    return %c0_i32, %c0_i32_0, %c0_i32_1 : i32, i32, i32
  }
  func.func @transform_2(%arg0: i32, %arg1: i32) -> (i32, i32, i32, i32) {
    %c0_i32 = arith.constant 0 : i32
    %c0_i32_0 = arith.constant 0 : i32
    %c0_i32_1 = arith.constant 0 : i32
    return %arg0, %c0_i32, %c0_i32_0, %arg1 : i32, i32, i32, i32
  }
}

</mosaic_0001>

<llo_original>
// kernel: a_call__.3
$region0: #{a_call__.3}
  #allocation0 [shape = 'u32[]', space=smem, size = 0x4, offset = 0x4, fixed_abs, tag = 'smem constant byte address 0x4 - core index']
  #allocation1 [shape = 'u32[72,128]{1,0:T(1,128)}', space=vmem, size = 0x9000, scoped, tag = 'internal scratch']
  %s0 = inlined_call_operand.vmem [shape: f32[2,2,4,8,256], index: 0, kind: input, shape index: {}]
  %s1 = inlined_call_operand.vmem [shape: f32[4,8,1], index: 1, kind: input, shape index: {}]
  %s2 = inlined_call_operand.vmem [shape: f32[2,4,8,256], index: 2, kind: output, shape index: {}]
  %s3 = sld [smem:[#allocation0]]
  $region41: #{a_call__.3} parent=0
    _
  %s5 = ssub.s32 1, %s3
  %s6 = scalar_select 0, %s5, %s3
  loop: start=0, step=1, limit=4
  $region2: #{a_call__.3} parent=0 // loop_pre_header
    _
  $region3: #{a_call__.3} parent=0 // loop_header
    %s8 = sphi 0, %s12
    %p9 = scmp.ge.s32.totalorder %s8, 4
    %s15 = sphi 0, %s27
    %s16 = sphi 0, %s23
    %s17 = sphi 0, %s15
    %s18 = sphi 0, %s16
    %s19 = sphi 0, %s17
    %s20 = sphi 0, %s18
    %s32 = sphi 0, %s34
    %s35 = sphi 0, %s32
    %s36 = sphi 0, %s35
    %s52 = sphi 0, %s36
    %s56 = sphi 0, %s56
    %s58 = sphi 0, %s56
    %s59 = sphi 0, %s58
    %s73 = sphi 0, %s59
    %s81 = sphi 0, %s83
    %s84 = sphi 0, %s81
    %s85 = sphi 0, %s84
    %s101 = sphi 0, %s85
  $region4: #{a_call__.3} parent=0 // loop_header_branch
    %11 = sbr.rel (%p9) target = $region8
  $region5: #{a_call__.3} parent=0 // loop_body
    %s13 = ssub.s32 %s8, 1
    %s14 = ssub.s32 %s8, 2
    %s21 = sadd.s32 1, %s16
    %p22 = scmp.ge.s32.totalorder %s21, 1
    %s23 = scalar_select %p22, 0, %s21
    %s24 = sadd.s32 1, %s15
    %s25 = scalar_select %p22, %s24, %s15
    %p26 = scmp.ge.s32.totalorder %s25, 2
    %s27 = scalar_select %p26, 0, %s25
    %s28 = ssub.s32 %s15, %s27
    %s29 = ssub.s32 %s16, %s23
    %s30 = sor.u32 %s28, %s29
    %p31 = scmp.eq.s32.totalorder %s30, 0
    %s33 = sadd.s32 %s32, 1
    %s34 = scalar_select %p31, %s32, %s33
    %p37 = pneg %p31
    %p38 = scmp.eq.s32.totalorder %s8, 1
    %p39 = por %p37, %p38
    %p40 = scmp.ne.s32.totalorder %s32, %s35
    %p41 = scmp.eq.s32.totalorder %s8, 0
    %p42 = por %p40, %p41
    %p43 = scmp.ne.s32.totalorder %s32, %s35
    %p44 = scmp.eq.s32.totalorder %s13, 1
    %p45 = por %p43, %p44
    %p46 = scmp.ne.s32.totalorder %s35, %s36
    %p47 = scmp.eq.s32.totalorder %s13, 0
    %p48 = por %p46, %p47
    %p49 = scmp.ne.s32.totalorder %s35, %s36
    %p50 = scmp.eq.s32.totalorder %s14, 1
    %p51 = por %p49, %p50
    %p53 = scmp.ne.s32.totalorder %s36, %s52
    %p54 = scmp.eq.s32.totalorder %s14, 0
    %p55 = por %p53, %p54
    %s57 = sadd.s32 %s56, 1
    %p60 = scmp.eq.s32.totalorder %s8, 1
    %p61 = scmp.ne.s32.totalorder %s56, %s58
    %p62 = scmp.eq.s32.totalorder %s8, 0
    %p63 = por %p61, %p62
    %p64 = scmp.ne.s32.totalorder %s56, %s58
    %p65 = scmp.eq.s32.totalorder %s13, 1
    %p66 = por %p64, %p65
    %p67 = scmp.ne.s32.totalorder %s58, %s59
    %p68 = scmp.eq.s32.totalorder %s13, 0
    %p69 = por %p67, %p68
    %p70 = scmp.ne.s32.totalorder %s58, %s59
    %p71 = scmp.eq.s32.totalorder %s14, 1
    %p72 = por %p70, %p71
    %p74 = scmp.ne.s32.totalorder %s59, %s73
    %p75 = scmp.eq.s32.totalorder %s14, 0
    %p76 = por %p74, %p75
    %s77 = ssub.s32 %s15, %s27
    %s78 = ssub.s32 %s16, %s23
    %s79 = sor.u32 %s77, %s78
    %p80 = scmp.eq.s32.totalorder %s79, 0
    %s82 = sadd.s32 %s81, 1
    %s83 = scalar_select %p80, %s81, %s82
    %p86 = pneg %p80
    %p87 = scmp.eq.s32.totalorder %s8, 1
    %p88 = por %p86, %p87
    %p89 = scmp.ne.s32.totalorder %s81, %s84
    %p90 = scmp.eq.s32.totalorder %s8, 0
    %p91 = por %p89, %p90
    %p92 = scmp.ne.s32.totalorder %s81, %s84
    %p93 = scmp.eq.s32.totalorder %s13, 1
    %p94 = por %p92, %p93
    %p95 = scmp.ne.s32.totalorder %s84, %s85
    %p96 = scmp.eq.s32.totalorder %s13, 0
    %p97 = por %p95, %p96
    %p98 = scmp.ne.s32.totalorder %s84, %s85
    %p99 = scmp.eq.s32.totalorder %s14, 1
    %p100 = por %p98, %p99
    %p102 = scmp.ne.s32.totalorder %s85, %s101
    %p103 = scmp.eq.s32.totalorder %s14, 0
    %p104 = por %p102, %p103
    %p105 = scmp.le.s32.totalorder 1, %s8
    %p106 = scmp.lt.s32.totalorder %s8, 3
    %p107 = pnand %p105, %p106
    %p108 = pneg %p107
    // Predicated region
    $region9: #{a_call__.3} parent=5 // pred_check
      _
    $region10: #{a_call__.3} parent=5 // pred_check_branch
      %110 = sbr.rel (%p107) target = $region12
    $region11: #{a_call__.3} parent=5 // pred_region
      %s111 = ssub.s32 %s8, 1
      // Predicated region
      $region13: #{a_call__.3} parent=11 // pred_check
        %p112 = pneg %p69
      $region14: #{a_call__.3} parent=11 // pred_check_branch
        %114 = sbr.rel (%p112) target = $region16
      $region15: #{a_call__.3} parent=11 // pred_region
        _
      $region16: #{a_call__.3} parent=11 // pred_fallthru
        _
    $region12: #{a_call__.3} parent=5 // pred_fallthru
      _
    %p115 = scmp.lt.s32.totalorder %s8, 2
    // Predicated region
    $region17: #{a_call__.3} parent=5 // pred_check
      %p116 = pneg %p115
    $region18: #{a_call__.3} parent=5 // pred_check_branch
      %118 = sbr.rel (%p116) target = $region20
    $region19: #{a_call__.3} parent=5 // pred_region
      // Predicated region
      $region21: #{a_call__.3} parent=19 // pred_check
        %p119 = pneg %p42
      $region22: #{a_call__.3} parent=19 // pred_check_branch
        %121 = sbr.rel (%p119) target = $region24
      $region23: #{a_call__.3} parent=19 // pred_region
        %s122 = smul.u32 2, %s16
        %p123 = scmp.lt.s32.totalorder %s15, 1
        %s124 = scalar_select %p123, %s15, 1
        %p125 = scmp.lt.s32.totalorder %s122, 1
        %s126 = scalar_select %p125, %s122, 1
        %s127 = smul.addr %s124, 16
        %s128 = sadd.s32 %s126, %s127
        %s129 = smul.addr %s128, 8
        %s130 = scalar_lea.vmem %s0, %s129
        %s131 = smul.u32 2, %s16
      $region24: #{a_call__.3} parent=19 // pred_fallthru
        _
    $region20: #{a_call__.3} parent=5 // pred_fallthru
      _
    %p132 = scmp.le.s32.totalorder 1, %s8
    %p133 = scmp.lt.s32.totalorder %s8, 3
    %p134 = pnand %p132, %p133
    %p135 = pneg %p134
    // Predicated region
    $region25: #{a_call__.3} parent=5 // pred_check
      _
    $region26: #{a_call__.3} parent=5 // pred_check_branch
      %137 = sbr.rel (%p134) target = $region28
    $region27: #{a_call__.3} parent=5 // pred_region
      %s138 = ssub.s32 %s8, 1
      %s139 = smul.u32 2, %s18
      %p140 = scmp.lt.s32.totalorder %s17, 1
      %s141 = scalar_select %p140, %s17, 1
      %p142 = scmp.lt.s32.totalorder %s139, 1
      %s143 = scalar_select %p142, %s139, 1
      %s144 = smul.addr %s141, 16
      %s145 = sadd.s32 %s143, %s144
      %s146 = smul.addr %s145, 8
      %s147 = scalar_lea.vmem %s0, %s146
      %p148 = pneg %p48
      %p149 = pneg %p45
      %p150 = pneg %p69
      %p151 = pneg %p66
      %p152 = pneg %p97
      %p153 = pneg %p94
      %s154 = smul.u32 2, %s18
      %p155 = scmp.lt.s32.totalorder %s17, 1
      %s156 = scalar_select %p155, %s17, 1
      %p157 = scmp.lt.s32.totalorder %s154, 1
      %s158 = scalar_select %p157, %s154, 1
      %s159 = smul.addr %s156, 8
      %s160 = sadd.s32 %s158, %s159
      %s161 = smul.addr %s160, 8
      %s162 = scalar_lea.vmem %s2, %s161
      %s163 = smul.u32 2, %s18
      %p164 = scmp.lt.s32.totalorder %s17, 1
      %s165 = scalar_select %p164, %s17, 1
      %p166 = scmp.lt.s32.totalorder %s163, 1
      %s167 = scalar_select %p166, %s163, 1
      %s168 = smul.addr %s165, 16
      %s169 = sadd.s32 %s167, %s168
      %s170 = smul.addr %s169, 8
      %s171 = scalar_lea.vmem %s0, %s170
      %s172 = smul.u32 2, %s18
      %s173 = smul.u32 2, %s18
      %p174 = scmp.lt.s32.totalorder %s17, 1
      %s175 = scalar_select %p174, %s17, 1
      %p176 = scmp.lt.s32.totalorder %s173, 1
      %s177 = scalar_select %p176, %s173, 1
      %s178 = smul.addr %s175, 8
      %s179 = sadd.s32 %s177, %s178
      %s180 = smul.addr %s179, 8
      %s181 = scalar_lea.vmem %s2, %s180
      %s182 = smul.u32 2, %s18
      %v183 = vld [vmem:[%s171] sm:$0xff]
      %v184 = vld [vmem:[%s171 + $0x8] sm:$0xff]
      %v185 = vld [vmem:[%s171 + $0x10] sm:$0xff]
      %v186 = vld [vmem:[%s171 + $0x18] sm:$0xff]
      %v187 = vld [vmem:[%s171 + $0x20] sm:$0xff]
      %v188 = vld [vmem:[%s171 + $0x28] sm:$0xff]
      %v189 = vld [vmem:[%s171 + $0x30] sm:$0xff]
      %v190 = vld [vmem:[%s171 + $0x38] sm:$0xff]
      %v191 = vld [vmem:[%s171 + $0x40] sm:$0xff]
      %v192 = vld [vmem:[%s171 + $0x48] sm:$0xff]
      %v193 = vld [vmem:[%s171 + $0x50] sm:$0xff]
      %v194 = vld [vmem:[%s171 + $0x58] sm:$0xff]
      %v195 = vld [vmem:[%s171 + $0x60] sm:$0xff]
      %v196 = vld [vmem:[%s171 + $0x68] sm:$0xff]
      %v197 = vld [vmem:[%s171 + $0x70] sm:$0xff]
      %v198 = vld [vmem:[%s171 + $0x78] sm:$0xff]
      %v199 = vld [vmem:[%s1] sm:$0xff]
      %v200 = vld [vmem:[%s1 + $0x8] sm:$0xff]
      %v201 = vld [vmem:[%s1 + $0x10] sm:$0xff]
      %v202 = vld [vmem:[%s1 + $0x18] sm:$0xff]
      %v203 = vadd.f32 %v183, %v191
      %v204 = vadd.f32 %v184, %v192
      %v205 = vadd.f32 %v185, %v193
      %v206 = vadd.f32 %v186, %v194
      %v207 = vadd.f32 %v187, %v195
      %v208 = vadd.f32 %v188, %v196
      %v209 = vadd.f32 %v189, %v197
      %v210 = vadd.f32 %v190, %v198
      %v211 = vmul.f32 %v203, 0.7310586
      %v212 = vmul.f32 %v204, 0.7310586
      %v213 = vmul.f32 %v205, 0.7310586
      %v214 = vmul.f32 %v206, 0.7310586
      %v215 = vmul.f32 %v207, 0.7310586
      %v216 = vmul.f32 %v208, 0.7310586
      %v217 = vmul.f32 %v209, 0.7310586
      %v218 = vmul.f32 %v210, 0.7310586
      %220 = vset.pattern.permute.xlu0 0
      %221 = vperm.xlu0 %220, %v199
      %v222 = vpop.permute.xlu0 %221
      %225 = vset.pattern.permute.xlu0 0
      %226 = vperm.xlu0 %225, %v200
      %v227 = vpop.permute.xlu0 %226
      %230 = vset.pattern.permute.xlu0 0
      %231 = vperm.xlu0 %230, %v201
      %v232 = vpop.permute.xlu0 %231
      %235 = vset.pattern.permute.xlu0 0
      %236 = vperm.xlu0 %235, %v202
      %v237 = vpop.permute.xlu0 %236
      %v239 = vadd.f32 %v211, %v222
      %v240 = vadd.f32 %v212, %v222
      %v241 = vadd.f32 %v213, %v227
      %v242 = vadd.f32 %v214, %v227
      %v243 = vadd.f32 %v215, %v232
      %v244 = vadd.f32 %v216, %v232
      %v245 = vadd.f32 %v217, %v237
      %v246 = vadd.f32 %v218, %v237
      %v247 = vmul.f32 %v239, %v239
      %v248 = vmul.f32 %v240, %v240
      %v249 = vmul.f32 %v241, %v241
      %v250 = vmul.f32 %v242, %v242
      %v251 = vmul.f32 %v243, %v243
      %v252 = vmul.f32 %v244, %v244
      %v253 = vmul.f32 %v245, %v245
      %v254 = vmul.f32 %v246, %v246
      %v255 = vrot.slane %v247, 4
      %v256 = vadd.f32 %v247, %v255
      %v257 = vrot.slane %v256, 2
      %v258 = vadd.f32 %v256, %v257
      %v259 = vrot.slane %v258, 1
      %v260 = vadd.f32 %v258, %v259
      %v261 = vrot.slane %v248, 4
      %v262 = vadd.f32 %v248, %v261
      %v263 = vrot.slane %v262, 2
      %v264 = vadd.f32 %v262, %v263
      %v265 = vrot.slane %v264, 1
      %v266 = vadd.f32 %v264, %v265
      %v267 = vrot.slane %v249, 4
      %v268 = vadd.f32 %v249, %v267
      %v269 = vrot.slane %v268, 2
      %v270 = vadd.f32 %v268, %v269
      %v271 = vrot.slane %v270, 1
      %v272 = vadd.f32 %v270, %v271
      %v273 = vrot.slane %v250, 4
      %v274 = vadd.f32 %v250, %v273
      %v275 = vrot.slane %v274, 2
      %v276 = vadd.f32 %v274, %v275
      %v277 = vrot.slane %v276, 1
      %v278 = vadd.f32 %v276, %v277
      %v279 = vrot.slane %v251, 4
      %v280 = vadd.f32 %v251, %v279
      %v281 = vrot.slane %v280, 2
      %v282 = vadd.f32 %v280, %v281
      %v283 = vrot.slane %v282, 1
      %v284 = vadd.f32 %v282, %v283
      %v285 = vrot.slane %v252, 4
      %v286 = vadd.f32 %v252, %v285
      %v287 = vrot.slane %v286, 2
      %v288 = vadd.f32 %v286, %v287
      %v289 = vrot.slane %v288, 1
      %v290 = vadd.f32 %v288, %v289
      %v291 = vrot.slane %v253, 4
      %v292 = vadd.f32 %v253, %v291
      %v293 = vrot.slane %v292, 2
      %v294 = vadd.f32 %v292, %v293
      %v295 = vrot.slane %v294, 1
      %v296 = vadd.f32 %v294, %v295
      %v297 = vrot.slane %v254, 4
      %v298 = vadd.f32 %v254, %v297
      %v299 = vrot.slane %v298, 2
      %v300 = vadd.f32 %v298, %v299
      %v301 = vrot.slane %v300, 1
      %v302 = vadd.f32 %v300, %v301
      %v303 = vadd.f32 %v260, 1.0
      %v304 = vadd.f32 %v266, 1.0
      %v305 = vadd.f32 %v272, 1.0
      %v306 = vadd.f32 %v278, 1.0
      %v307 = vadd.f32 %v284, 1.0
      %v308 = vadd.f32 %v290, 1.0
      %v309 = vadd.f32 %v296, 1.0
      %v310 = vadd.f32 %v302, 1.0
      %v311 = vrcp.pop %v303
      %v312 = vmul.f32 %v303, %v311
      %v313 = vsub.f32 1.0, %v312
      %v314 = vmul.f32 %v311, %v313
      %v315 = vadd.f32 %v311, %v314
      %vm316 = vweird.f32 %v303
      %vm317 = vweird.f32 %v311
      %vm318 = vmor %vm316, %vm317
      %v319 = vsel %vm318, %v311, %v315
      %v320 = vand.u32 2147483647, %v303
      %vm321 = vcmp.eq.f32.partialorder %v320, 8.507059e+37
      %v322 = vand.u32 %v303, 2147483648
      %v323 = vor.u32 1.1754944e-38, %v322
      %v324 = vsel %vm321, %v323, %v319
      %v325 = vmul.f32 %v260, %v324
      %v326 = vrcp.pop %v304
      %v327 = vmul.f32 %v304, %v326
      %v328 = vsub.f32 1.0, %v327
      %v329 = vmul.f32 %v326, %v328
      %v330 = vadd.f32 %v326, %v329
      %vm331 = vweird.f32 %v304
      %vm332 = vweird.f32 %v326
      %vm333 = vmor %vm331, %vm332
      %v334 = vsel %vm333, %v326, %v330
      %v335 = vand.u32 2147483647, %v304
      %vm336 = vcmp.eq.f32.partialorder %v335, 8.507059e+37
      %v337 = vand.u32 %v304, 2147483648
      %v338 = vor.u32 1.1754944e-38, %v337
      %v339 = vsel %vm336, %v338, %v334
      %v340 = vmul.f32 %v266, %v339
      %v341 = vrcp.pop %v305
      %v342 = vmul.f32 %v305, %v341
      %v343 = vsub.f32 1.0, %v342
      %v344 = vmul.f32 %v341, %v343
      %v345 = vadd.f32 %v341, %v344
      %vm346 = vweird.f32 %v305
      %vm347 = vweird.f32 %v341
      %vm348 = vmor %vm346, %vm347
      %v349 = vsel %vm348, %v341, %v345
      %v350 = vand.u32 2147483647, %v305
      %vm351 = vcmp.eq.f32.partialorder %v350, 8.507059e+37
      %v352 = vand.u32 %v305, 2147483648
      %v353 = vor.u32 1.1754944e-38, %v352
      %v354 = vsel %vm351, %v353, %v349
      %v355 = vmul.f32 %v272, %v354
      %v356 = vrcp.pop %v306
      %v357 = vmul.f32 %v306, %v356
      %v358 = vsub.f32 1.0, %v357
      %v359 = vmul.f32 %v356, %v358
      %v360 = vadd.f32 %v356, %v359
      %vm361 = vweird.f32 %v306
      %vm362 = vweird.f32 %v356
      %vm363 = vmor %vm361, %vm362
      %v364 = vsel %vm363, %v356, %v360
      %v365 = vand.u32 2147483647, %v306
      %vm366 = vcmp.eq.f32.partialorder %v365, 8.507059e+37
      %v367 = vand.u32 %v306, 2147483648
      %v368 = vor.u32 1.1754944e-38, %v367
      %v369 = vsel %vm366, %v368, %v364
      %v370 = vmul.f32 %v278, %v369
      %v371 = vrcp.pop %v307
      %v372 = vmul.f32 %v307, %v371
      %v373 = vsub.f32 1.0, %v372
      %v374 = vmul.f32 %v371, %v373
      %v375 = vadd.f32 %v371, %v374
      %vm376 = vweird.f32 %v307
      %vm377 = vweird.f32 %v371
      %vm378 = vmor %vm376, %vm377
      %v379 = vsel %vm378, %v371, %v375
      %v380 = vand.u32 2147483647, %v307
      %vm381 = vcmp.eq.f32.partialorder %v380, 8.507059e+37
      %v382 = vand.u32 %v307, 2147483648
      %v383 = vor.u32 1.1754944e-38, %v382
      %v384 = vsel %vm381, %v383, %v379
      %v385 = vmul.f32 %v284, %v384
      %v386 = vrcp.pop %v308
      %v387 = vmul.f32 %v308, %v386
      %v388 = vsub.f32 1.0, %v387
      %v389 = vmul.f32 %v386, %v388
      %v390 = vadd.f32 %v386, %v389
      %vm391 = vweird.f32 %v308
      %vm392 = vweird.f32 %v386
      %vm393 = vmor %vm391, %vm392
      %v394 = vsel %vm393, %v386, %v390
      %v395 = vand.u32 2147483647, %v308
      %vm396 = vcmp.eq.f32.partialorder %v395, 8.507059e+37
      %v397 = vand.u32 %v308, 2147483648
      %v398 = vor.u32 1.1754944e-38, %v397
      %v399 = vsel %vm396, %v398, %v394
      %v400 = vmul.f32 %v290, %v399
      %v401 = vrcp.pop %v309
      %v402 = vmul.f32 %v309, %v401
      %v403 = vsub.f32 1.0, %v402
      %v404 = vmul.f32 %v401, %v403
      %v405 = vadd.f32 %v401, %v404
      %vm406 = vweird.f32 %v309
      %vm407 = vweird.f32 %v401
      %vm408 = vmor %vm406, %vm407
      %v409 = vsel %vm408, %v401, %v405
      %v410 = vand.u32 2147483647, %v309
      %vm411 = vcmp.eq.f32.partialorder %v410, 8.507059e+37
      %v412 = vand.u32 %v309, 2147483648
      %v413 = vor.u32 1.1754944e-38, %v412
      %v414 = vsel %vm411, %v413, %v409
      %v415 = vmul.f32 %v296, %v414
      %v416 = vrcp.pop %v310
      %v417 = vmul.f32 %v310, %v416
      %v418 = vsub.f32 1.0, %v417
      %v419 = vmul.f32 %v416, %v418
      %v420 = vadd.f32 %v416, %v419
      %vm421 = vweird.f32 %v310
      %vm422 = vweird.f32 %v416
      %vm423 = vmor %vm421, %vm422
      %v424 = vsel %vm423, %v416, %v420
      %v425 = vand.u32 2147483647, %v310
      %vm426 = vcmp.eq.f32.partialorder %v425, 8.507059e+37
      %v427 = vand.u32 %v310, 2147483648
      %v428 = vor.u32 1.1754944e-38, %v427
      %v429 = vsel %vm426, %v428, %v424
      %v430 = vmul.f32 %v302, %v429
      %v431 = vmul.f32 %v325, %v239
      %v432 = vmul.f32 %v340, %v240
      %v433 = vmul.f32 %v355, %v241
      %v434 = vmul.f32 %v370, %v242
      %v435 = vmul.f32 %v385, %v243
      %v436 = vmul.f32 %v400, %v244
      %v437 = vmul.f32 %v415, %v245
      %v438 = vmul.f32 %v430, %v246
      %v439 = vadd.f32 %v260, 1e-07
      %v440 = vadd.f32 %v266, 1e-07
      %v441 = vadd.f32 %v272, 1e-07
      %v442 = vadd.f32 %v278, 1e-07
      %v443 = vadd.f32 %v284, 1e-07
      %v444 = vadd.f32 %v290, 1e-07
      %v445 = vadd.f32 %v296, 1e-07
      %v446 = vadd.f32 %v302, 1e-07
      %v447 = vrsqrt.pop %v439
      %v448 = vmul.f32 %v447, %v439
      %v449 = vmul.f32 %v448, %v447
      %v450 = vmul.f32 0.5, %v449
      %v451 = vsub.f32 1.5, %v450
      %v452 = vmul.f32 %v447, %v451
      %vm453 = vweird.f32 %v439
      %vm454 = vweird.f32 %v447
      %vm455 = vmor %vm453, %vm454
      %v456 = vsel %vm455, %v447, %v452
      %v457 = vrsqrt.pop %v440
      %v458 = vmul.f32 %v457, %v440
      %v459 = vmul.f32 %v458, %v457
      %v460 = vmul.f32 0.5, %v459
      %v461 = vsub.f32 1.5, %v460
      %v462 = vmul.f32 %v457, %v461
      %vm463 = vweird.f32 %v440
      %vm464 = vweird.f32 %v457
      %vm465 = vmor %vm463, %vm464
      %v466 = vsel %vm465, %v457, %v462
      %v467 = vrsqrt.pop %v441
      %v468 = vmul.f32 %v467, %v441
      %v469 = vmul.f32 %v468, %v467
      %v470 = vmul.f32 0.5, %v469
      %v471 = vsub.f32 1.5, %v470
      %v472 = vmul.f32 %v467, %v471
      %vm473 = vweird.f32 %v441
      %vm474 = vweird.f32 %v467
      %vm475 = vmor %vm473, %vm474
      %v476 = vsel %vm475, %v467, %v472
      %v477 = vrsqrt.pop %v442
      %v478 = vmul.f32 %v477, %v442
      %v479 = vmul.f32 %v478, %v477
      %v480 = vmul.f32 0.5, %v479
      %v481 = vsub.f32 1.5, %v480
      %v482 = vmul.f32 %v477, %v481
      %vm483 = vweird.f32 %v442
      %vm484 = vweird.f32 %v477
      %vm485 = vmor %vm483, %vm484
      %v486 = vsel %vm485, %v477, %v482
      %v487 = vrsqrt.pop %v443
      %v488 = vmul.f32 %v487, %v443
      %v489 = vmul.f32 %v488, %v487
      %v490 = vmul.f32 0.5, %v489
      %v491 = vsub.f32 1.5, %v490
      %v492 = vmul.f32 %v487, %v491
      %vm493 = vweird.f32 %v443
      %vm494 = vweird.f32 %v487
      %vm495 = vmor %vm493, %vm494
      %v496 = vsel %vm495, %v487, %v492
      %v497 = vrsqrt.pop %v444
      %v498 = vmul.f32 %v497, %v444
      %v499 = vmul.f32 %v498, %v497
      %v500 = vmul.f32 0.5, %v499
      %v501 = vsub.f32 1.5, %v500
      %v502 = vmul.f32 %v497, %v501
      %vm503 = vweird.f32 %v444
      %vm504 = vweird.f32 %v497
      %vm505 = vmor %vm503, %vm504
      %v506 = vsel %vm505, %v497, %v502
      %v507 = vrsqrt.pop %v445
      %v508 = vmul.f32 %v507, %v445
      %v509 = vmul.f32 %v508, %v507
      %v510 = vmul.f32 0.5, %v509
      %v511 = vsub.f32 1.5, %v510
      %v512 = vmul.f32 %v507, %v511
      %vm513 = vweird.f32 %v445
      %vm514 = vweird.f32 %v507
      %vm515 = vmor %vm513, %vm514
      %v516 = vsel %vm515, %v507, %v512
      %v517 = vrsqrt.pop %v446
      %v518 = vmul.f32 %v517, %v446
      %v519 = vmul.f32 %v518, %v517
      %v520 = vmul.f32 0.5, %v519
      %v521 = vsub.f32 1.5, %v520
      %v522 = vmul.f32 %v517, %v521
      %vm523 = vweird.f32 %v446
      %vm524 = vweird.f32 %v517
      %vm525 = vmor %vm523, %vm524
      %v526 = vsel %vm525, %v517, %v522
      %v527 = vmul.f32 %v431, %v456
      %v528 = vmul.f32 %v432, %v466
      %v529 = vmul.f32 %v433, %v476
      %v530 = vmul.f32 %v434, %v486
      %v531 = vmul.f32 %v435, %v496
      %v532 = vmul.f32 %v436, %v506
      %v533 = vmul.f32 %v437, %v516
      %v534 = vmul.f32 %v438, %v526
      %v535 = vmul.f32 %v183, %v527
      %v536 = vmul.f32 %v184, %v528
      %v537 = vmul.f32 %v185, %v529
      %v538 = vmul.f32 %v186, %v530
      %v539 = vmul.f32 %v187, %v531
      %v540 = vmul.f32 %v188, %v532
      %v541 = vmul.f32 %v189, %v533
      %v542 = vmul.f32 %v190, %v534
      %v543 = vmul.f32 %v191, %v527
      %v544 = vmul.f32 %v192, %v528
      %v545 = vmul.f32 %v193, %v529
      %v546 = vmul.f32 %v194, %v530
      %v547 = vmul.f32 %v195, %v531
      %v548 = vmul.f32 %v196, %v532
      %v549 = vmul.f32 %v197, %v533
      %v550 = vmul.f32 %v198, %v534
      %v551 = vrot.slane %v535, 4
      %v552 = vadd.f32 %v535, %v551
      %v553 = vrot.slane %v552, 2
      %v554 = vadd.f32 %v552, %v553
      %v555 = vrot.slane %v554, 1
      %v556 = vadd.f32 %v554, %v555
      %v557 = vrot.slane %v536, 4
      %v558 = vadd.f32 %v536, %v557
      %v559 = vrot.slane %v558, 2
      %v560 = vadd.f32 %v558, %v559
      %v561 = vrot.slane %v560, 1
      %v562 = vadd.f32 %v560, %v561
      %v563 = vrot.slane %v537, 4
      %v564 = vadd.f32 %v537, %v563
      %v565 = vrot.slane %v564, 2
      %v566 = vadd.f32 %v564, %v565
      %v567 = vrot.slane %v566, 1
      %v568 = vadd.f32 %v566, %v567
      %v569 = vrot.slane %v538, 4
      %v570 = vadd.f32 %v538, %v569
      %v571 = vrot.slane %v570, 2
      %v572 = vadd.f32 %v570, %v571
      %v573 = vrot.slane %v572, 1
      %v574 = vadd.f32 %v572, %v573
      %v575 = vrot.slane %v539, 4
      %v576 = vadd.f32 %v539, %v575
      %v577 = vrot.slane %v576, 2
      %v578 = vadd.f32 %v576, %v577
      %v579 = vrot.slane %v578, 1
      %v580 = vadd.f32 %v578, %v579
      %v581 = vrot.slane %v540, 4
      %v582 = vadd.f32 %v540, %v581
      %v583 = vrot.slane %v582, 2
      %v584 = vadd.f32 %v582, %v583
      %v585 = vrot.slane %v584, 1
      %v586 = vadd.f32 %v584, %v585
      %v587 = vrot.slane %v541, 4
      %v588 = vadd.f32 %v541, %v587
      %v589 = vrot.slane %v588, 2
      %v590 = vadd.f32 %v588, %v589
      %v591 = vrot.slane %v590, 1
      %v592 = vadd.f32 %v590, %v591
      %v593 = vrot.slane %v542, 4
      %v594 = vadd.f32 %v542, %v593
      %v595 = vrot.slane %v594, 2
      %v596 = vadd.f32 %v594, %v595
      %v597 = vrot.slane %v596, 1
      %v598 = vadd.f32 %v596, %v597
      %v599 = vrot.slane %v543, 4
      %v600 = vadd.f32 %v543, %v599
      %v601 = vrot.slane %v600, 2
      %v602 = vadd.f32 %v600, %v601
      %v603 = vrot.slane %v602, 1
      %v604 = vadd.f32 %v602, %v603
      %v605 = vrot.slane %v544, 4
      %v606 = vadd.f32 %v544, %v605
      %v607 = vrot.slane %v606, 2
      %v608 = vadd.f32 %v606, %v607
      %v609 = vrot.slane %v608, 1
      %v610 = vadd.f32 %v608, %v609
      %v611 = vrot.slane %v545, 4
      %v612 = vadd.f32 %v545, %v611
      %v613 = vrot.slane %v612, 2
      %v614 = vadd.f32 %v612, %v613
      %v615 = vrot.slane %v614, 1
      %v616 = vadd.f32 %v614, %v615
      %v617 = vrot.slane %v546, 4
      %v618 = vadd.f32 %v546, %v617
      %v619 = vrot.slane %v618, 2
      %v620 = vadd.f32 %v618, %v619
      %v621 = vrot.slane %v620, 1
      %v622 = vadd.f32 %v620, %v621
      %v623 = vrot.slane %v547, 4
      %v624 = vadd.f32 %v547, %v623
      %v625 = vrot.slane %v624, 2
      %v626 = vadd.f32 %v624, %v625
      %v627 = vrot.slane %v626, 1
      %v628 = vadd.f32 %v626, %v627
      %v629 = vrot.slane %v548, 4
      %v630 = vadd.f32 %v548, %v629
      %v631 = vrot.slane %v630, 2
      %v632 = vadd.f32 %v630, %v631
      %v633 = vrot.slane %v632, 1
      %v634 = vadd.f32 %v632, %v633
      %v635 = vrot.slane %v549, 4
      %v636 = vadd.f32 %v549, %v635
      %v637 = vrot.slane %v636, 2
      %v638 = vadd.f32 %v636, %v637
      %v639 = vrot.slane %v638, 1
      %v640 = vadd.f32 %v638, %v639
      %v641 = vrot.slane %v550, 4
      %v642 = vadd.f32 %v550, %v641
      %v643 = vrot.slane %v642, 2
      %v644 = vadd.f32 %v642, %v643
      %v645 = vrot.slane %v644, 1
      %v646 = vadd.f32 %v644, %v645
      %v647 = vadd.f32 %v556, 1.0
      %v648 = vadd.f32 %v562, 1.0
      %v649 = vadd.f32 %v568, 1.0
      %v650 = vadd.f32 %v574, 1.0
      %v651 = vadd.f32 %v580, 1.0
      %v652 = vadd.f32 %v586, 1.0
      %v653 = vadd.f32 %v592, 1.0
      %v654 = vadd.f32 %v598, 1.0
      %v655 = vadd.f32 %v604, 1.0
      %v656 = vadd.f32 %v610, 1.0
      %v657 = vadd.f32 %v616, 1.0
      %v658 = vadd.f32 %v622, 1.0
      %v659 = vadd.f32 %v628, 1.0
      %v660 = vadd.f32 %v634, 1.0
      %v661 = vadd.f32 %v640, 1.0
      %v662 = vadd.f32 %v646, 1.0
      %v663 = vxor.u32 %v647, 2147483648
      %v664 = vxor.u32 %v648, 2147483648
      %v665 = vxor.u32 %v649, 2147483648
      %v666 = vxor.u32 %v650, 2147483648
      %v667 = vxor.u32 %v651, 2147483648
      %v668 = vxor.u32 %v652, 2147483648
      %v669 = vxor.u32 %v653, 2147483648
      %v670 = vxor.u32 %v654, 2147483648
      %v671 = vxor.u32 %v655, 2147483648
      %v672 = vxor.u32 %v656, 2147483648
      %v673 = vxor.u32 %v657, 2147483648
      %v674 = vxor.u32 %v658, 2147483648
      %v675 = vxor.u32 %v659, 2147483648
      %v676 = vxor.u32 %v660, 2147483648
      %v677 = vxor.u32 %v661, 2147483648
      %v678 = vxor.u32 %v662, 2147483648
      %v679 = vmul.f32 %v663, 1.442695
      %v680 = vpow.pop %v679
      %v681 = vmul.f32 %v664, 1.442695
      %v682 = vpow.pop %v681
      %v683 = vmul.f32 %v665, 1.442695
      %v684 = vpow.pop %v683
      %v685 = vmul.f32 %v666, 1.442695
      %v686 = vpow.pop %v685
      %v687 = vmul.f32 %v667, 1.442695
      %v688 = vpow.pop %v687
      %v689 = vmul.f32 %v668, 1.442695
      %v690 = vpow.pop %v689
      %v691 = vmul.f32 %v669, 1.442695
      %v692 = vpow.pop %v691
      %v693 = vmul.f32 %v670, 1.442695
      %v694 = vpow.pop %v693
      %v695 = vmul.f32 %v671, 1.442695
      %v696 = vpow.pop %v695
      %v697 = vmul.f32 %v672, 1.442695
      %v698 = vpow.pop %v697
      %v699 = vmul.f32 %v673, 1.442695
      %v700 = vpow.pop %v699
      %v701 = vmul.f32 %v674, 1.442695
      %v702 = vpow.pop %v701
      %v703 = vmul.f32 %v675, 1.442695
      %v704 = vpow.pop %v703
      %v705 = vmul.f32 %v676, 1.442695
      %v706 = vpow.pop %v705
      %v707 = vmul.f32 %v677, 1.442695
      %v708 = vpow.pop %v707
      %v709 = vmul.f32 %v678, 1.442695
      %v710 = vpow.pop %v709
      %v711 = vadd.f32 %v680, 1.0
      %v712 = vadd.f32 %v682, 1.0
      %v713 = vadd.f32 %v684, 1.0
      %v714 = vadd.f32 %v686, 1.0
      %v715 = vadd.f32 %v688, 1.0
      %v716 = vadd.f32 %v690, 1.0
      %v717 = vadd.f32 %v692, 1.0
      %v718 = vadd.f32 %v694, 1.0
      %v719 = vadd.f32 %v696, 1.0
      %v720 = vadd.f32 %v698, 1.0
      %v721 = vadd.f32 %v700, 1.0
      %v722 = vadd.f32 %v702, 1.0
      %v723 = vadd.f32 %v704, 1.0
      %v724 = vadd.f32 %v706, 1.0
      %v725 = vadd.f32 %v708, 1.0
      %v726 = vadd.f32 %v710, 1.0
      %v727 = vrcp.pop %v711
      %v728 = vmul.f32 %v711, %v727
      %v729 = vsub.f32 1.0, %v728
      %v730 = vmul.f32 %v727, %v729
      %v731 = vadd.f32 %v727, %v730
      %vm732 = vweird.f32 %v711
      %vm733 = vweird.f32 %v727
      %vm734 = vmor %vm732, %vm733
      %v735 = vsel %vm734, %v727, %v731
      %v736 = vand.u32 2147483647, %v711
      %vm737 = vcmp.eq.f32.partialorder %v736, 8.507059e+37
      %v738 = vand.u32 %v711, 2147483648
      %v739 = vor.u32 1.1754944e-38, %v738
      %v740 = vsel %vm737, %v739, %v735
      %v741 = vmul.f32 1.0, %v740
      %v742 = vrcp.pop %v712
      %v743 = vmul.f32 %v712, %v742
      %v744 = vsub.f32 1.0, %v743
      %v745 = vmul.f32 %v742, %v744
      %v746 = vadd.f32 %v742, %v745
      %vm747 = vweird.f32 %v712
      %vm748 = vweird.f32 %v742
      %vm749 = vmor %vm747, %vm748
      %v750 = vsel %vm749, %v742, %v746
      %v751 = vand.u32 2147483647, %v712
      %vm752 = vcmp.eq.f32.partialorder %v751, 8.507059e+37
      %v753 = vand.u32 %v712, 2147483648
      %v754 = vor.u32 1.1754944e-38, %v753
      %v755 = vsel %vm752, %v754, %v750
      %v756 = vmul.f32 1.0, %v755
      %v757 = vrcp.pop %v713
      %v758 = vmul.f32 %v713, %v757
      %v759 = vsub.f32 1.0, %v758
      %v760 = vmul.f32 %v757, %v759
      %v761 = vadd.f32 %v757, %v760
      %vm762 = vweird.f32 %v713
      %vm763 = vweird.f32 %v757
      %vm764 = vmor %vm762, %vm763
      %v765 = vsel %vm764, %v757, %v761
      %v766 = vand.u32 2147483647, %v713
      %vm767 = vcmp.eq.f32.partialorder %v766, 8.507059e+37
      %v768 = vand.u32 %v713, 2147483648
      %v769 = vor.u32 1.1754944e-38, %v768
      %v770 = vsel %vm767, %v769, %v765
      %v771 = vmul.f32 1.0, %v770
      %v772 = vrcp.pop %v714
      %v773 = vmul.f32 %v714, %v772
      %v774 = vsub.f32 1.0, %v773
      %v775 = vmul.f32 %v772, %v774
      %v776 = vadd.f32 %v772, %v775
      %vm777 = vweird.f32 %v714
      %vm778 = vweird.f32 %v772
      %vm779 = vmor %vm777, %vm778
      %v780 = vsel %vm779, %v772, %v776
      %v781 = vand.u32 2147483647, %v714
      %vm782 = vcmp.eq.f32.partialorder %v781, 8.507059e+37
      %v783 = vand.u32 %v714, 2147483648
      %v784 = vor.u32 1.1754944e-38, %v783
      %v785 = vsel %vm782, %v784, %v780
      %v786 = vmul.f32 1.0, %v785
      %v787 = vrcp.pop %v715
      %v788 = vmul.f32 %v715, %v787
      %v789 = vsub.f32 1.0, %v788
      %v790 = vmul.f32 %v787, %v789
      %v791 = vadd.f32 %v787, %v790
      %vm792 = vweird.f32 %v715
      %vm793 = vweird.f32 %v787
      %vm794 = vmor %vm792, %vm793
      %v795 = vsel %vm794, %v787, %v791
      %v796 = vand.u32 2147483647, %v715
      %vm797 = vcmp.eq.f32.partialorder %v796, 8.507059e+37
      %v798 = vand.u32 %v715, 2147483648
      %v799 = vor.u32 1.1754944e-38, %v798
      %v800 = vsel %vm797, %v799, %v795
      %v801 = vmul.f32 1.0, %v800
      %v802 = vrcp.pop %v716
      %v803 = vmul.f32 %v716, %v802
      %v804 = vsub.f32 1.0, %v803
      %v805 = vmul.f32 %v802, %v804
      %v806 = vadd.f32 %v802, %v805
      %vm807 = vweird.f32 %v716
      %vm808 = vweird.f32 %v802
      %vm809 = vmor %vm807, %vm808
      %v810 = vsel %vm809, %v802, %v806
      %v811 = vand.u32 2147483647, %v716
      %vm812 = vcmp.eq.f32.partialorder %v811, 8.507059e+37
      %v813 = vand.u32 %v716, 2147483648
      %v814 = vor.u32 1.1754944e-38, %v813
      %v815 = vsel %vm812, %v814, %v810
      %v816 = vmul.f32 1.0, %v815
      %v817 = vrcp.pop %v717
      %v818 = vmul.f32 %v717, %v817
      %v819 = vsub.f32 1.0, %v818
      %v820 = vmul.f32 %v817, %v819
      %v821 = vadd.f32 %v817, %v820
      %vm822 = vweird.f32 %v717
      %vm823 = vweird.f32 %v817
      %vm824 = vmor %vm822, %vm823
      %v825 = vsel %vm824, %v817, %v821
      %v826 = vand.u32 2147483647, %v717
      %vm827 = vcmp.eq.f32.partialorder %v826, 8.507059e+37
      %v828 = vand.u32 %v717, 2147483648
      %v829 = vor.u32 1.1754944e-38, %v828
      %v830 = vsel %vm827, %v829, %v825
      %v831 = vmul.f32 1.0, %v830
      %v832 = vrcp.pop %v718
      %v833 = vmul.f32 %v718, %v832
      %v834 = vsub.f32 1.0, %v833
      %v835 = vmul.f32 %v832, %v834
      %v836 = vadd.f32 %v832, %v835
      %vm837 = vweird.f32 %v718
      %vm838 = vweird.f32 %v832
      %vm839 = vmor %vm837, %vm838
      %v840 = vsel %vm839, %v832, %v836
      %v841 = vand.u32 2147483647, %v718
      %vm842 = vcmp.eq.f32.partialorder %v841, 8.507059e+37
      %v843 = vand.u32 %v718, 2147483648
      %v844 = vor.u32 1.1754944e-38, %v843
      %v845 = vsel %vm842, %v844, %v840
      %v846 = vmul.f32 1.0, %v845
      %v847 = vrcp.pop %v719
      %v848 = vmul.f32 %v719, %v847
      %v849 = vsub.f32 1.0, %v848
      %v850 = vmul.f32 %v847, %v849
      %v851 = vadd.f32 %v847, %v850
      %vm852 = vweird.f32 %v719
      %vm853 = vweird.f32 %v847
      %vm854 = vmor %vm852, %vm853
      %v855 = vsel %vm854, %v847, %v851
      %v856 = vand.u32 2147483647, %v719
      %vm857 = vcmp.eq.f32.partialorder %v856, 8.507059e+37
      %v858 = vand.u32 %v719, 2147483648
      %v859 = vor.u32 1.1754944e-38, %v858
      %v860 = vsel %vm857, %v859, %v855
      %v861 = vmul.f32 1.0, %v860
      %v862 = vrcp.pop %v720
      %v863 = vmul.f32 %v720, %v862
      %v864 = vsub.f32 1.0, %v863
      %v865 = vmul.f32 %v862, %v864
      %v866 = vadd.f32 %v862, %v865
      %vm867 = vweird.f32 %v720
      %vm868 = vweird.f32 %v862
      %vm869 = vmor %vm867, %vm868
      %v870 = vsel %vm869, %v862, %v866
      %v871 = vand.u32 2147483647, %v720
      %vm872 = vcmp.eq.f32.partialorder %v871, 8.507059e+37
      %v873 = vand.u32 %v720, 2147483648
      %v874 = vor.u32 1.1754944e-38, %v873
      %v875 = vsel %vm872, %v874, %v870
      %v876 = vmul.f32 1.0, %v875
      %v877 = vrcp.pop %v721
      %v878 = vmul.f32 %v721, %v877
      %v879 = vsub.f32 1.0, %v878
      %v880 = vmul.f32 %v877, %v879
      %v881 = vadd.f32 %v877, %v880
      %vm882 = vweird.f32 %v721
      %vm883 = vweird.f32 %v877
      %vm884 = vmor %vm882, %vm883
      %v885 = vsel %vm884, %v877, %v881
      %v886 = vand.u32 2147483647, %v721
      %vm887 = vcmp.eq.f32.partialorder %v886, 8.507059e+37
      %v888 = vand.u32 %v721, 2147483648
      %v889 = vor.u32 1.1754944e-38, %v888
      %v890 = vsel %vm887, %v889, %v885
      %v891 = vmul.f32 1.0, %v890
      %v892 = vrcp.pop %v722
      %v893 = vmul.f32 %v722, %v892
      %v894 = vsub.f32 1.0, %v893
      %v895 = vmul.f32 %v892, %v894
      %v896 = vadd.f32 %v892, %v895
      %vm897 = vweird.f32 %v722
      %vm898 = vweird.f32 %v892
      %vm899 = vmor %vm897, %vm898
      %v900 = vsel %vm899, %v892, %v896
      %v901 = vand.u32 2147483647, %v722
      %vm902 = vcmp.eq.f32.partialorder %v901, 8.507059e+37
      %v903 = vand.u32 %v722, 2147483648
      %v904 = vor.u32 1.1754944e-38, %v903
      %v905 = vsel %vm902, %v904, %v900
      %v906 = vmul.f32 1.0, %v905
      %v907 = vrcp.pop %v723
      %v908 = vmul.f32 %v723, %v907
      %v909 = vsub.f32 1.0, %v908
      %v910 = vmul.f32 %v907, %v909
      %v911 = vadd.f32 %v907, %v910
      %vm912 = vweird.f32 %v723
      %vm913 = vweird.f32 %v907
      %vm914 = vmor %vm912, %vm913
      %v915 = vsel %vm914, %v907, %v911
      %v916 = vand.u32 2147483647, %v723
      %vm917 = vcmp.eq.f32.partialorder %v916, 8.507059e+37
      %v918 = vand.u32 %v723, 2147483648
      %v919 = vor.u32 1.1754944e-38, %v918
      %v920 = vsel %vm917, %v919, %v915
      %v921 = vmul.f32 1.0, %v920
      %v922 = vrcp.pop %v724
      %v923 = vmul.f32 %v724, %v922
      %v924 = vsub.f32 1.0, %v923
      %v925 = vmul.f32 %v922, %v924
      %v926 = vadd.f32 %v922, %v925
      %vm927 = vweird.f32 %v724
      %vm928 = vweird.f32 %v922
      %vm929 = vmor %vm927, %vm928
      %v930 = vsel %vm929, %v922, %v926
      %v931 = vand.u32 2147483647, %v724
      %vm932 = vcmp.eq.f32.partialorder %v931, 8.507059e+37
      %v933 = vand.u32 %v724, 2147483648
      %v934 = vor.u32 1.1754944e-38, %v933
      %v935 = vsel %vm932, %v934, %v930
      %v936 = vmul.f32 1.0, %v935
      %v937 = vrcp.pop %v725
      %v938 = vmul.f32 %v725, %v937
      %v939 = vsub.f32 1.0, %v938
      %v940 = vmul.f32 %v937, %v939
      %v941 = vadd.f32 %v937, %v940
      %vm942 = vweird.f32 %v725
      %vm943 = vweird.f32 %v937
      %vm944 = vmor %vm942, %vm943
      %v945 = vsel %vm944, %v937, %v941
      %v946 = vand.u32 2147483647, %v725
      %vm947 = vcmp.eq.f32.partialorder %v946, 8.507059e+37
      %v948 = vand.u32 %v725, 2147483648
      %v949 = vor.u32 1.1754944e-38, %v948
      %v950 = vsel %vm947, %v949, %v945
      %v951 = vmul.f32 1.0, %v950
      %v952 = vrcp.pop %v726
      %v953 = vmul.f32 %v726, %v952
      %v954 = vsub.f32 1.0, %v953
      %v955 = vmul.f32 %v952, %v954
      %v956 = vadd.f32 %v952, %v955
      %vm957 = vweird.f32 %v726
      %vm958 = vweird.f32 %v952
      %vm959 = vmor %vm957, %vm958
      %v960 = vsel %vm959, %v952, %v956
      %v961 = vand.u32 2147483647, %v726
      %vm962 = vcmp.eq.f32.partialorder %v961, 8.507059e+37
      %v963 = vand.u32 %v726, 2147483648
      %v964 = vor.u32 1.1754944e-38, %v963
      %v965 = vsel %vm962, %v964, %v960
      %v966 = vmul.f32 1.0, %v965
      %v967 = vmul.f32 %v741, %v183
      %v968 = vmul.f32 %v756, %v184
      %v969 = vmul.f32 %v771, %v185
      %v970 = vmul.f32 %v786, %v186
      %v971 = vmul.f32 %v801, %v187
      %v972 = vmul.f32 %v816, %v188
      %v973 = vmul.f32 %v831, %v189
      %v974 = vmul.f32 %v846, %v190
      %v975 = vmul.f32 %v861, %v191
      %v976 = vmul.f32 %v876, %v192
      %v977 = vmul.f32 %v891, %v193
      %v978 = vmul.f32 %v906, %v194
      %v979 = vmul.f32 %v921, %v195
      %v980 = vmul.f32 %v936, %v196
      %v981 = vmul.f32 %v951, %v197
      %v982 = vmul.f32 %v966, %v198
      %v983 = vadd.f32 %v967, %v975
      %v984 = vadd.f32 %v968, %v976
      %v985 = vadd.f32 %v969, %v977
      %v986 = vadd.f32 %v970, %v978
      %v987 = vadd.f32 %v971, %v979
      %v988 = vadd.f32 %v972, %v980
      %v989 = vadd.f32 %v973, %v981
      %v990 = vadd.f32 %v974, %v982
      %v991 = vadd.f32 %v983, %v222
      %v992 = vadd.f32 %v984, %v222
      %v993 = vadd.f32 %v985, %v227
      %v994 = vadd.f32 %v986, %v227
      %v995 = vadd.f32 %v987, %v232
      %v996 = vadd.f32 %v988, %v232
      %v997 = vadd.f32 %v989, %v237
      %v998 = vadd.f32 %v990, %v237
      %v999 = vmul.f32 %v991, %v991
      %v1000 = vmul.f32 %v992, %v992
      %v1001 = vmul.f32 %v993, %v993
      %v1002 = vmul.f32 %v994, %v994
      %v1003 = vmul.f32 %v995, %v995
      %v1004 = vmul.f32 %v996, %v996
      %v1005 = vmul.f32 %v997, %v997
      %v1006 = vmul.f32 %v998, %v998
      %v1007 = vrot.slane %v999, 4
      %v1008 = vadd.f32 %v999, %v1007
      %v1009 = vrot.slane %v1008, 2
      %v1010 = vadd.f32 %v1008, %v1009
      %v1011 = vrot.slane %v1010, 1
      %v1012 = vadd.f32 %v1010, %v1011
      %v1013 = vrot.slane %v1000, 4
      %v1014 = vadd.f32 %v1000, %v1013
      %v1015 = vrot.slane %v1014, 2
      %v1016 = vadd.f32 %v1014, %v1015
      %v1017 = vrot.slane %v1016, 1
      %v1018 = vadd.f32 %v1016, %v1017
      %v1019 = vrot.slane %v1001, 4
      %v1020 = vadd.f32 %v1001, %v1019
      %v1021 = vrot.slane %v1020, 2
      %v1022 = vadd.f32 %v1020, %v1021
      %v1023 = vrot.slane %v1022, 1
      %v1024 = vadd.f32 %v1022, %v1023
      %v1025 = vrot.slane %v1002, 4
      %v1026 = vadd.f32 %v1002, %v1025
      %v1027 = vrot.slane %v1026, 2
      %v1028 = vadd.f32 %v1026, %v1027
      %v1029 = vrot.slane %v1028, 1
      %v1030 = vadd.f32 %v1028, %v1029
      %v1031 = vrot.slane %v1003, 4
      %v1032 = vadd.f32 %v1003, %v1031
      %v1033 = vrot.slane %v1032, 2
      %v1034 = vadd.f32 %v1032, %v1033
      %v1035 = vrot.slane %v1034, 1
      %v1036 = vadd.f32 %v1034, %v1035
      %v1037 = vrot.slane %v1004, 4
      %v1038 = vadd.f32 %v1004, %v1037
      %v1039 = vrot.slane %v1038, 2
      %v1040 = vadd.f32 %v1038, %v1039
      %v1041 = vrot.slane %v1040, 1
      %v1042 = vadd.f32 %v1040, %v1041
      %v1043 = vrot.slane %v1005, 4
      %v1044 = vadd.f32 %v1005, %v1043
      %v1045 = vrot.slane %v1044, 2
      %v1046 = vadd.f32 %v1044, %v1045
      %v1047 = vrot.slane %v1046, 1
      %v1048 = vadd.f32 %v1046, %v1047
      %v1049 = vrot.slane %v1006, 4
      %v1050 = vadd.f32 %v1006, %v1049
      %v1051 = vrot.slane %v1050, 2
      %v1052 = vadd.f32 %v1050, %v1051
      %v1053 = vrot.slane %v1052, 1
      %v1054 = vadd.f32 %v1052, %v1053
      %v1055 = vadd.f32 %v1012, 1.0
      %v1056 = vadd.f32 %v1018, 1.0
      %v1057 = vadd.f32 %v1024, 1.0
      %v1058 = vadd.f32 %v1030, 1.0
      %v1059 = vadd.f32 %v1036, 1.0
      %v1060 = vadd.f32 %v1042, 1.0
      %v1061 = vadd.f32 %v1048, 1.0
      %v1062 = vadd.f32 %v1054, 1.0
      %v1063 = vrcp.pop %v1055
      %v1064 = vmul.f32 %v1055, %v1063
      %v1065 = vsub.f32 1.0, %v1064
      %v1066 = vmul.f32 %v1063, %v1065
      %v1067 = vadd.f32 %v1063, %v1066
      %vm1068 = vweird.f32 %v1055
      %vm1069 = vweird.f32 %v1063
      %vm1070 = vmor %vm1068, %vm1069
      %v1071 = vsel %vm1070, %v1063, %v1067
      %v1072 = vand.u32 2147483647, %v1055
      %vm1073 = vcmp.eq.f32.partialorder %v1072, 8.507059e+37
      %v1074 = vand.u32 %v1055, 2147483648
      %v1075 = vor.u32 1.1754944e-38, %v1074
      %v1076 = vsel %vm1073, %v1075, %v1071
      %v1077 = vmul.f32 %v1012, %v1076
      %v1078 = vrcp.pop %v1056
      %v1079 = vmul.f32 %v1056, %v1078
      %v1080 = vsub.f32 1.0, %v1079
      %v1081 = vmul.f32 %v1078, %v1080
      %v1082 = vadd.f32 %v1078, %v1081
      %vm1083 = vweird.f32 %v1056
      %vm1084 = vweird.f32 %v1078
      %vm1085 = vmor %vm1083, %vm1084
      %v1086 = vsel %vm1085, %v1078, %v1082
      %v1087 = vand.u32 2147483647, %v1056
      %vm1088 = vcmp.eq.f32.partialorder %v1087, 8.507059e+37
      %v1089 = vand.u32 %v1056, 2147483648
      %v1090 = vor.u32 1.1754944e-38, %v1089
      %v1091 = vsel %vm1088, %v1090, %v1086
      %v1092 = vmul.f32 %v1018, %v1091
      %v1093 = vrcp.pop %v1057
      %v1094 = vmul.f32 %v1057, %v1093
      %v1095 = vsub.f32 1.0, %v1094
      %v1096 = vmul.f32 %v1093, %v1095
      %v1097 = vadd.f32 %v1093, %v1096
      %vm1098 = vweird.f32 %v1057
      %vm1099 = vweird.f32 %v1093
      %vm1100 = vmor %vm1098, %vm1099
      %v1101 = vsel %vm1100, %v1093, %v1097
      %v1102 = vand.u32 2147483647, %v1057
      %vm1103 = vcmp.eq.f32.partialorder %v1102, 8.507059e+37
      %v1104 = vand.u32 %v1057, 2147483648
      %v1105 = vor.u32 1.1754944e-38, %v1104
      %v1106 = vsel %vm1103, %v1105, %v1101
      %v1107 = vmul.f32 %v1024, %v1106
      %v1108 = vrcp.pop %v1058
      %v1109 = vmul.f32 %v1058, %v1108
      %v1110 = vsub.f32 1.0, %v1109
      %v1111 = vmul.f32 %v1108, %v1110
      %v1112 = vadd.f32 %v1108, %v1111
      %vm1113 = vweird.f32 %v1058
      %vm1114 = vweird.f32 %v1108
      %vm1115 = vmor %vm1113, %vm1114
      %v1116 = vsel %vm1115, %v1108, %v1112
      %v1117 = vand.u32 2147483647, %v1058
      %vm1118 = vcmp.eq.f32.partialorder %v1117, 8.507059e+37
      %v1119 = vand.u32 %v1058, 2147483648
      %v1120 = vor.u32 1.1754944e-38, %v1119
      %v1121 = vsel %vm1118, %v1120, %v1116
      %v1122 = vmul.f32 %v1030, %v1121
      %v1123 = vrcp.pop %v1059
      %v1124 = vmul.f32 %v1059, %v1123
      %v1125 = vsub.f32 1.0, %v1124
      %v1126 = vmul.f32 %v1123, %v1125
      %v1127 = vadd.f32 %v1123, %v1126
      %vm1128 = vweird.f32 %v1059
      %vm1129 = vweird.f32 %v1123
      %vm1130 = vmor %vm1128, %vm1129
      %v1131 = vsel %vm1130, %v1123, %v1127
      %v1132 = vand.u32 2147483647, %v1059
      %vm1133 = vcmp.eq.f32.partialorder %v1132, 8.507059e+37
      %v1134 = vand.u32 %v1059, 2147483648
      %v1135 = vor.u32 1.1754944e-38, %v1134
      %v1136 = vsel %vm1133, %v1135, %v1131
      %v1137 = vmul.f32 %v1036, %v1136
      %v1138 = vrcp.pop %v1060
      %v1139 = vmul.f32 %v1060, %v1138
      %v1140 = vsub.f32 1.0, %v1139
      %v1141 = vmul.f32 %v1138, %v1140
      %v1142 = vadd.f32 %v1138, %v1141
      %vm1143 = vweird.f32 %v1060
      %vm1144 = vweird.f32 %v1138
      %vm1145 = vmor %vm1143, %vm1144
      %v1146 = vsel %vm1145, %v1138, %v1142
      %v1147 = vand.u32 2147483647, %v1060
      %vm1148 = vcmp.eq.f32.partialorder %v1147, 8.507059e+37
      %v1149 = vand.u32 %v1060, 2147483648
      %v1150 = vor.u32 1.1754944e-38, %v1149
      %v1151 = vsel %vm1148, %v1150, %v1146
      %v1152 = vmul.f32 %v1042, %v1151
      %v1153 = vrcp.pop %v1061
      %v1154 = vmul.f32 %v1061, %v1153
      %v1155 = vsub.f32 1.0, %v1154
      %v1156 = vmul.f32 %v1153, %v1155
      %v1157 = vadd.f32 %v1153, %v1156
      %vm1158 = vweird.f32 %v1061
      %vm1159 = vweird.f32 %v1153
      %vm1160 = vmor %vm1158, %vm1159
      %v1161 = vsel %vm1160, %v1153, %v1157
      %v1162 = vand.u32 2147483647, %v1061
      %vm1163 = vcmp.eq.f32.partialorder %v1162, 8.507059e+37
      %v1164 = vand.u32 %v1061, 2147483648
      %v1165 = vor.u32 1.1754944e-38, %v1164
      %v1166 = vsel %vm1163, %v1165, %v1161
      %v1167 = vmul.f32 %v1048, %v1166
      %v1168 = vrcp.pop %v1062
      %v1169 = vmul.f32 %v1062, %v1168
      %v1170 = vsub.f32 1.0, %v1169
      %v1171 = vmul.f32 %v1168, %v1170
      %v1172 = vadd.f32 %v1168, %v1171
      %vm1173 = vweird.f32 %v1062
      %vm1174 = vweird.f32 %v1168
      %vm1175 = vmor %vm1173, %vm1174
      %v1176 = vsel %vm1175, %v1168, %v1172
      %v1177 = vand.u32 2147483647, %v1062
      %vm1178 = vcmp.eq.f32.partialorder %v1177, 8.507059e+37
      %v1179 = vand.u32 %v1062, 2147483648
      %v1180 = vor.u32 1.1754944e-38, %v1179
      %v1181 = vsel %vm1178, %v1180, %v1176
      %v1182 = vmul.f32 %v1054, %v1181
      %v1183 = vmul.f32 %v1077, %v991
      %v1184 = vmul.f32 %v1092, %v992
      %v1185 = vmul.f32 %v1107, %v993
      %v1186 = vmul.f32 %v1122, %v994
      %v1187 = vmul.f32 %v1137, %v995
      %v1188 = vmul.f32 %v1152, %v996
      %v1189 = vmul.f32 %v1167, %v997
      %v1190 = vmul.f32 %v1182, %v998
      %v1191 = vadd.f32 %v1012, 1e-07
      %v1192 = vadd.f32 %v1018, 1e-07
      %v1193 = vadd.f32 %v1024, 1e-07
      %v1194 = vadd.f32 %v1030, 1e-07
      %v1195 = vadd.f32 %v1036, 1e-07
      %v1196 = vadd.f32 %v1042, 1e-07
      %v1197 = vadd.f32 %v1048, 1e-07
      %v1198 = vadd.f32 %v1054, 1e-07
      %v1199 = vrsqrt.pop %v1191
      %v1200 = vmul.f32 %v1199, %v1191
      %v1201 = vmul.f32 %v1200, %v1199
      %v1202 = vmul.f32 0.5, %v1201
      %v1203 = vsub.f32 1.5, %v1202
      %v1204 = vmul.f32 %v1199, %v1203
      %vm1205 = vweird.f32 %v1191
      %vm1206 = vweird.f32 %v1199
      %vm1207 = vmor %vm1205, %vm1206
      %v1208 = vsel %vm1207, %v1199, %v1204
      %v1209 = vrsqrt.pop %v1192
      %v1210 = vmul.f32 %v1209, %v1192
      %v1211 = vmul.f32 %v1210, %v1209
      %v1212 = vmul.f32 0.5, %v1211
      %v1213 = vsub.f32 1.5, %v1212
      %v1214 = vmul.f32 %v1209, %v1213
      %vm1215 = vweird.f32 %v1192
      %vm1216 = vweird.f32 %v1209
      %vm1217 = vmor %vm1215, %vm1216
      %v1218 = vsel %vm1217, %v1209, %v1214
      %v1219 = vrsqrt.pop %v1193
      %v1220 = vmul.f32 %v1219, %v1193
      %v1221 = vmul.f32 %v1220, %v1219
      %v1222 = vmul.f32 0.5, %v1221
      %v1223 = vsub.f32 1.5, %v1222
      %v1224 = vmul.f32 %v1219, %v1223
      %vm1225 = vweird.f32 %v1193
      %vm1226 = vweird.f32 %v1219
      %vm1227 = vmor %vm1225, %vm1226
      %v1228 = vsel %vm1227, %v1219, %v1224
      %v1229 = vrsqrt.pop %v1194
      %v1230 = vmul.f32 %v1229, %v1194
      %v1231 = vmul.f32 %v1230, %v1229
      %v1232 = vmul.f32 0.5, %v1231
      %v1233 = vsub.f32 1.5, %v1232
      %v1234 = vmul.f32 %v1229, %v1233
      %vm1235 = vweird.f32 %v1194
      %vm1236 = vweird.f32 %v1229
      %vm1237 = vmor %vm1235, %vm1236
      %v1238 = vsel %vm1237, %v1229, %v1234
      %v1239 = vrsqrt.pop %v1195
      %v1240 = vmul.f32 %v1239, %v1195
      %v1241 = vmul.f32 %v1240, %v1239
      %v1242 = vmul.f32 0.5, %v1241
      %v1243 = vsub.f32 1.5, %v1242
      %v1244 = vmul.f32 %v1239, %v1243
      %vm1245 = vweird.f32 %v1195
      %vm1246 = vweird.f32 %v1239
      %vm1247 = vmor %vm1245, %vm1246
      %v1248 = vsel %vm1247, %v1239, %v1244
      %v1249 = vrsqrt.pop %v1196
      %v1250 = vmul.f32 %v1249, %v1196
      %v1251 = vmul.f32 %v1250, %v1249
      %v1252 = vmul.f32 0.5, %v1251
      %v1253 = vsub.f32 1.5, %v1252
      %v1254 = vmul.f32 %v1249, %v1253
      %vm1255 = vweird.f32 %v1196
      %vm1256 = vweird.f32 %v1249
      %vm1257 = vmor %vm1255, %vm1256
      %v1258 = vsel %vm1257, %v1249, %v1254
      %v1259 = vrsqrt.pop %v1197
      %v1260 = vmul.f32 %v1259, %v1197
      %v1261 = vmul.f32 %v1260, %v1259
      %v1262 = vmul.f32 0.5, %v1261
      %v1263 = vsub.f32 1.5, %v1262
      %v1264 = vmul.f32 %v1259, %v1263
      %vm1265 = vweird.f32 %v1197
      %vm1266 = vweird.f32 %v1259
      %vm1267 = vmor %vm1265, %vm1266
      %v1268 = vsel %vm1267, %v1259, %v1264
      %v1269 = vrsqrt.pop %v1198
      %v1270 = vmul.f32 %v1269, %v1198
      %v1271 = vmul.f32 %v1270, %v1269
      %v1272 = vmul.f32 0.5, %v1271
      %v1273 = vsub.f32 1.5, %v1272
      %v1274 = vmul.f32 %v1269, %v1273
      %vm1275 = vweird.f32 %v1198
      %vm1276 = vweird.f32 %v1269
      %vm1277 = vmor %vm1275, %vm1276
      %v1278 = vsel %vm1277, %v1269, %v1274
      %v1279 = vmul.f32 %v1183, %v1208
      %v1280 = vmul.f32 %v1184, %v1218
      %v1281 = vmul.f32 %v1185, %v1228
      %v1282 = vmul.f32 %v1186, %v1238
      %v1283 = vmul.f32 %v1187, %v1248
      %v1284 = vmul.f32 %v1188, %v1258
      %v1285 = vmul.f32 %v1189, %v1268
      %v1286 = vmul.f32 %v1190, %v1278
      %v1287 = vmul.f32 %v183, %v1279
      %v1288 = vmul.f32 %v184, %v1280
      %v1289 = vmul.f32 %v185, %v1281
      %v1290 = vmul.f32 %v186, %v1282
      %v1291 = vmul.f32 %v187, %v1283
      %v1292 = vmul.f32 %v188, %v1284
      %v1293 = vmul.f32 %v189, %v1285
      %v1294 = vmul.f32 %v190, %v1286
      %v1295 = vmul.f32 %v191, %v1279
      %v1296 = vmul.f32 %v192, %v1280
      %v1297 = vmul.f32 %v193, %v1281
      %v1298 = vmul.f32 %v194, %v1282
      %v1299 = vmul.f32 %v195, %v1283
      %v1300 = vmul.f32 %v196, %v1284
      %v1301 = vmul.f32 %v197, %v1285
      %v1302 = vmul.f32 %v198, %v1286
      %v1303 = vrot.slane %v1287, 4
      %v1304 = vadd.f32 %v1287, %v1303
      %v1305 = vrot.slane %v1304, 2
      %v1306 = vadd.f32 %v1304, %v1305
      %v1307 = vrot.slane %v1306, 1
      %v1308 = vadd.f32 %v1306, %v1307
      %v1309 = vrot.slane %v1288, 4
      %v1310 = vadd.f32 %v1288, %v1309
      %v1311 = vrot.slane %v1310, 2
      %v1312 = vadd.f32 %v1310, %v1311
      %v1313 = vrot.slane %v1312, 1
      %v1314 = vadd.f32 %v1312, %v1313
      %v1315 = vrot.slane %v1289, 4
      %v1316 = vadd.f32 %v1289, %v1315
      %v1317 = vrot.slane %v1316, 2
      %v1318 = vadd.f32 %v1316, %v1317
      %v1319 = vrot.slane %v1318, 1
      %v1320 = vadd.f32 %v1318, %v1319
      %v1321 = vrot.slane %v1290, 4
      %v1322 = vadd.f32 %v1290, %v1321
      %v1323 = vrot.slane %v1322, 2
      %v1324 = vadd.f32 %v1322, %v1323
      %v1325 = vrot.slane %v1324, 1
      %v1326 = vadd.f32 %v1324, %v1325
      %v1327 = vrot.slane %v1291, 4
      %v1328 = vadd.f32 %v1291, %v1327
      %v1329 = vrot.slane %v1328, 2
      %v1330 = vadd.f32 %v1328, %v1329
      %v1331 = vrot.slane %v1330, 1
      %v1332 = vadd.f32 %v1330, %v1331
      %v1333 = vrot.slane %v1292, 4
      %v1334 = vadd.f32 %v1292, %v1333
      %v1335 = vrot.slane %v1334, 2
      %v1336 = vadd.f32 %v1334, %v1335
      %v1337 = vrot.slane %v1336, 1
      %v1338 = vadd.f32 %v1336, %v1337
      %v1339 = vrot.slane %v1293, 4
      %v1340 = vadd.f32 %v1293, %v1339
      %v1341 = vrot.slane %v1340, 2
      %v1342 = vadd.f32 %v1340, %v1341
      %v1343 = vrot.slane %v1342, 1
      %v1344 = vadd.f32 %v1342, %v1343
      %v1345 = vrot.slane %v1294, 4
      %v1346 = vadd.f32 %v1294, %v1345
      %v1347 = vrot.slane %v1346, 2
      %v1348 = vadd.f32 %v1346, %v1347
      %v1349 = vrot.slane %v1348, 1
      %v1350 = vadd.f32 %v1348, %v1349
      %v1351 = vrot.slane %v1295, 4
      %v1352 = vadd.f32 %v1295, %v1351
      %v1353 = vrot.slane %v1352, 2
      %v1354 = vadd.f32 %v1352, %v1353
      %v1355 = vrot.slane %v1354, 1
      %v1356 = vadd.f32 %v1354, %v1355
      %v1357 = vrot.slane %v1296, 4
      %v1358 = vadd.f32 %v1296, %v1357
      %v1359 = vrot.slane %v1358, 2
      %v1360 = vadd.f32 %v1358, %v1359
      %v1361 = vrot.slane %v1360, 1
      %v1362 = vadd.f32 %v1360, %v1361
      %v1363 = vrot.slane %v1297, 4
      %v1364 = vadd.f32 %v1297, %v1363
      %v1365 = vrot.slane %v1364, 2
      %v1366 = vadd.f32 %v1364, %v1365
      %v1367 = vrot.slane %v1366, 1
      %v1368 = vadd.f32 %v1366, %v1367
      %v1369 = vrot.slane %v1298, 4
      %v1370 = vadd.f32 %v1298, %v1369
      %v1371 = vrot.slane %v1370, 2
      %v1372 = vadd.f32 %v1370, %v1371
      %v1373 = vrot.slane %v1372, 1
      %v1374 = vadd.f32 %v1372, %v1373
      %v1375 = vrot.slane %v1299, 4
      %v1376 = vadd.f32 %v1299, %v1375
      %v1377 = vrot.slane %v1376, 2
      %v1378 = vadd.f32 %v1376, %v1377
      %v1379 = vrot.slane %v1378, 1
      %v1380 = vadd.f32 %v1378, %v1379
      %v1381 = vrot.slane %v1300, 4
      %v1382 = vadd.f32 %v1300, %v1381
      %v1383 = vrot.slane %v1382, 2
      %v1384 = vadd.f32 %v1382, %v1383
      %v1385 = vrot.slane %v1384, 1
      %v1386 = vadd.f32 %v1384, %v1385
      %v1387 = vrot.slane %v1301, 4
      %v1388 = vadd.f32 %v1301, %v1387
      %v1389 = vrot.slane %v1388, 2
      %v1390 = vadd.f32 %v1388, %v1389
      %v1391 = vrot.slane %v1390, 1
      %v1392 = vadd.f32 %v1390, %v1391
      %v1393 = vrot.slane %v1302, 4
      %v1394 = vadd.f32 %v1302, %v1393
      %v1395 = vrot.slane %v1394, 2
      %v1396 = vadd.f32 %v1394, %v1395
      %v1397 = vrot.slane %v1396, 1
      %v1398 = vadd.f32 %v1396, %v1397
      %v1399 = vadd.f32 %v647, %v1308
      %v1400 = vadd.f32 %v648, %v1314
      %v1401 = vadd.f32 %v649, %v1320
      %v1402 = vadd.f32 %v650, %v1326
      %v1403 = vadd.f32 %v651, %v1332
      %v1404 = vadd.f32 %v652, %v1338
      %v1405 = vadd.f32 %v653, %v1344
      %v1406 = vadd.f32 %v654, %v1350
      %v1407 = vadd.f32 %v655, %v1356
      %v1408 = vadd.f32 %v656, %v1362
      %v1409 = vadd.f32 %v657, %v1368
      %v1410 = vadd.f32 %v658, %v1374
      %v1411 = vadd.f32 %v659, %v1380
      %v1412 = vadd.f32 %v660, %v1386
      %v1413 = vadd.f32 %v661, %v1392
      %v1414 = vadd.f32 %v662, %v1398
      %v1415 = vxor.u32 %v1399, 2147483648
      %v1416 = vxor.u32 %v1400, 2147483648
      %v1417 = vxor.u32 %v1401, 2147483648
      %v1418 = vxor.u32 %v1402, 2147483648
      %v1419 = vxor.u32 %v1403, 2147483648
      %v1420 = vxor.u32 %v1404, 2147483648
      %v1421 = vxor.u32 %v1405, 2147483648
      %v1422 = vxor.u32 %v1406, 2147483648
      %v1423 = vxor.u32 %v1407, 2147483648
      %v1424 = vxor.u32 %v1408, 2147483648
      %v1425 = vxor.u32 %v1409, 2147483648
      %v1426 = vxor.u32 %v1410, 2147483648
      %v1427 = vxor.u32 %v1411, 2147483648
      %v1428 = vxor.u32 %v1412, 2147483648
      %v1429 = vxor.u32 %v1413, 2147483648
      %v1430 = vxor.u32 %v1414, 2147483648
      %v1431 = vmul.f32 %v1415, 1.442695
      %v1432 = vpow.pop %v1431
      %v1433 = vmul.f32 %v1416, 1.442695
      %v1434 = vpow.pop %v1433
      %v1435 = vmul.f32 %v1417, 1.442695
      %v1436 = vpow.pop %v1435
      %v1437 = vmul.f32 %v1418, 1.442695
      %v1438 = vpow.pop %v1437
      %v1439 = vmul.f32 %v1419, 1.442695
      %v1440 = vpow.pop %v1439
      %v1441 = vmul.f32 %v1420, 1.442695
      %v1442 = vpow.pop %v1441
      %v1443 = vmul.f32 %v1421, 1.442695
      %v1444 = vpow.pop %v1443
      %v1445 = vmul.f32 %v1422, 1.442695
      %v1446 = vpow.pop %v1445
      %v1447 = vmul.f32 %v1423, 1.442695
      %v1448 = vpow.pop %v1447
      %v1449 = vmul.f32 %v1424, 1.442695
      %v1450 = vpow.pop %v1449
      %v1451 = vmul.f32 %v1425, 1.442695
      %v1452 = vpow.pop %v1451
      %v1453 = vmul.f32 %v1426, 1.442695
      %v1454 = vpow.pop %v1453
      %v1455 = vmul.f32 %v1427, 1.442695
      %v1456 = vpow.pop %v1455
      %v1457 = vmul.f32 %v1428, 1.442695
      %v1458 = vpow.pop %v1457
      %v1459 = vmul.f32 %v1429, 1.442695
      %v1460 = vpow.pop %v1459
      %v1461 = vmul.f32 %v1430, 1.442695
      %v1462 = vpow.pop %v1461
      %v1463 = vadd.f32 %v1432, 1.0
      %v1464 = vadd.f32 %v1434, 1.0
      %v1465 = vadd.f32 %v1436, 1.0
      %v1466 = vadd.f32 %v1438, 1.0
      %v1467 = vadd.f32 %v1440, 1.0
      %v1468 = vadd.f32 %v1442, 1.0
      %v1469 = vadd.f32 %v1444, 1.0
      %v1470 = vadd.f32 %v1446, 1.0
      %v1471 = vadd.f32 %v1448, 1.0
      %v1472 = vadd.f32 %v1450, 1.0
      %v1473 = vadd.f32 %v1452, 1.0
      %v1474 = vadd.f32 %v1454, 1.0
      %v1475 = vadd.f32 %v1456, 1.0
      %v1476 = vadd.f32 %v1458, 1.0
      %v1477 = vadd.f32 %v1460, 1.0
      %v1478 = vadd.f32 %v1462, 1.0
      %v1479 = vrcp.pop %v1463
      %v1480 = vmul.f32 %v1463, %v1479
      %v1481 = vsub.f32 1.0, %v1480
      %v1482 = vmul.f32 %v1479, %v1481
      %v1483 = vadd.f32 %v1479, %v1482
      %vm1484 = vweird.f32 %v1463
      %vm1485 = vweird.f32 %v1479
      %vm1486 = vmor %vm1484, %vm1485
      %v1487 = vsel %vm1486, %v1479, %v1483
      %v1488 = vand.u32 2147483647, %v1463
      %vm1489 = vcmp.eq.f32.partialorder %v1488, 8.507059e+37
      %v1490 = vand.u32 %v1463, 2147483648
      %v1491 = vor.u32 1.1754944e-38, %v1490
      %v1492 = vsel %vm1489, %v1491, %v1487
      %v1493 = vmul.f32 1.0, %v1492
      %v1494 = vrcp.pop %v1464
      %v1495 = vmul.f32 %v1464, %v1494
      %v1496 = vsub.f32 1.0, %v1495
      %v1497 = vmul.f32 %v1494, %v1496
      %v1498 = vadd.f32 %v1494, %v1497
      %vm1499 = vweird.f32 %v1464
      %vm1500 = vweird.f32 %v1494
      %vm1501 = vmor %vm1499, %vm1500
      %v1502 = vsel %vm1501, %v1494, %v1498
      %v1503 = vand.u32 2147483647, %v1464
      %vm1504 = vcmp.eq.f32.partialorder %v1503, 8.507059e+37
      %v1505 = vand.u32 %v1464, 2147483648
      %v1506 = vor.u32 1.1754944e-38, %v1505
      %v1507 = vsel %vm1504, %v1506, %v1502
      %v1508 = vmul.f32 1.0, %v1507
      %v1509 = vrcp.pop %v1465
      %v1510 = vmul.f32 %v1465, %v1509
      %v1511 = vsub.f32 1.0, %v1510
      %v1512 = vmul.f32 %v1509, %v1511
      %v1513 = vadd.f32 %v1509, %v1512
      %vm1514 = vweird.f32 %v1465
      %vm1515 = vweird.f32 %v1509
      %vm1516 = vmor %vm1514, %vm1515
      %v1517 = vsel %vm1516, %v1509, %v1513
      %v1518 = vand.u32 2147483647, %v1465
      %vm1519 = vcmp.eq.f32.partialorder %v1518, 8.507059e+37
      %v1520 = vand.u32 %v1465, 2147483648
      %v1521 = vor.u32 1.1754944e-38, %v1520
      %v1522 = vsel %vm1519, %v1521, %v1517
      %v1523 = vmul.f32 1.0, %v1522
      %v1524 = vrcp.pop %v1466
      %v1525 = vmul.f32 %v1466, %v1524
      %v1526 = vsub.f32 1.0, %v1525
      %v1527 = vmul.f32 %v1524, %v1526
      %v1528 = vadd.f32 %v1524, %v1527
      %vm1529 = vweird.f32 %v1466
      %vm1530 = vweird.f32 %v1524
      %vm1531 = vmor %vm1529, %vm1530
      %v1532 = vsel %vm1531, %v1524, %v1528
      %v1533 = vand.u32 2147483647, %v1466
      %vm1534 = vcmp.eq.f32.partialorder %v1533, 8.507059e+37
      %v1535 = vand.u32 %v1466, 2147483648
      %v1536 = vor.u32 1.1754944e-38, %v1535
      %v1537 = vsel %vm1534, %v1536, %v1532
      %v1538 = vmul.f32 1.0, %v1537
      %v1539 = vrcp.pop %v1467
      %v1540 = vmul.f32 %v1467, %v1539
      %v1541 = vsub.f32 1.0, %v1540
      %v1542 = vmul.f32 %v1539, %v1541
      %v1543 = vadd.f32 %v1539, %v1542
      %vm1544 = vweird.f32 %v1467
      %vm1545 = vweird.f32 %v1539
      %vm1546 = vmor %vm1544, %vm1545
      %v1547 = vsel %vm1546, %v1539, %v1543
      %v1548 = vand.u32 2147483647, %v1467
      %vm1549 = vcmp.eq.f32.partialorder %v1548, 8.507059e+37
      %v1550 = vand.u32 %v1467, 2147483648
      %v1551 = vor.u32 1.1754944e-38, %v1550
      %v1552 = vsel %vm1549, %v1551, %v1547
      %v1553 = vmul.f32 1.0, %v1552
      %v1554 = vrcp.pop %v1468
      %v1555 = vmul.f32 %v1468, %v1554
      %v1556 = vsub.f32 1.0, %v1555
      %v1557 = vmul.f32 %v1554, %v1556
      %v1558 = vadd.f32 %v1554, %v1557
      %vm1559 = vweird.f32 %v1468
      %vm1560 = vweird.f32 %v1554
      %vm1561 = vmor %vm1559, %vm1560
      %v1562 = vsel %vm1561, %v1554, %v1558
      %v1563 = vand.u32 2147483647, %v1468
      %vm1564 = vcmp.eq.f32.partialorder %v1563, 8.507059e+37
      %v1565 = vand.u32 %v1468, 2147483648
      %v1566 = vor.u32 1.1754944e-38, %v1565
      %v1567 = vsel %vm1564, %v1566, %v1562
      %v1568 = vmul.f32 1.0, %v1567
      %v1569 = vrcp.pop %v1469
      %v1570 = vmul.f32 %v1469, %v1569
      %v1571 = vsub.f32 1.0, %v1570
      %v1572 = vmul.f32 %v1569, %v1571
      %v1573 = vadd.f32 %v1569, %v1572
      %vm1574 = vweird.f32 %v1469
      %vm1575 = vweird.f32 %v1569
      %vm1576 = vmor %vm1574, %vm1575
      %v1577 = vsel %vm1576, %v1569, %v1573
      %v1578 = vand.u32 2147483647, %v1469
      %vm1579 = vcmp.eq.f32.partialorder %v1578, 8.507059e+37
      %v1580 = vand.u32 %v1469, 2147483648
      %v1581 = vor.u32 1.1754944e-38, %v1580
      %v1582 = vsel %vm1579, %v1581, %v1577
      %v1583 = vmul.f32 1.0, %v1582
      %v1584 = vrcp.pop %v1470
      %v1585 = vmul.f32 %v1470, %v1584
      %v1586 = vsub.f32 1.0, %v1585
      %v1587 = vmul.f32 %v1584, %v1586
      %v1588 = vadd.f32 %v1584, %v1587
      %vm1589 = vweird.f32 %v1470
      %vm1590 = vweird.f32 %v1584
      %vm1591 = vmor %vm1589, %vm1590
      %v1592 = vsel %vm1591, %v1584, %v1588
      %v1593 = vand.u32 2147483647, %v1470
      %vm1594 = vcmp.eq.f32.partialorder %v1593, 8.507059e+37
      %v1595 = vand.u32 %v1470, 2147483648
      %v1596 = vor.u32 1.1754944e-38, %v1595
      %v1597 = vsel %vm1594, %v1596, %v1592
      %v1598 = vmul.f32 1.0, %v1597
      %v1599 = vrcp.pop %v1471
      %v1600 = vmul.f32 %v1471, %v1599
      %v1601 = vsub.f32 1.0, %v1600
      %v1602 = vmul.f32 %v1599, %v1601
      %v1603 = vadd.f32 %v1599, %v1602
      %vm1604 = vweird.f32 %v1471
      %vm1605 = vweird.f32 %v1599
      %vm1606 = vmor %vm1604, %vm1605
      %v1607 = vsel %vm1606, %v1599, %v1603
      %v1608 = vand.u32 2147483647, %v1471
      %vm1609 = vcmp.eq.f32.partialorder %v1608, 8.507059e+37
      %v1610 = vand.u32 %v1471, 2147483648
      %v1611 = vor.u32 1.1754944e-38, %v1610
      %v1612 = vsel %vm1609, %v1611, %v1607
      %v1613 = vmul.f32 1.0, %v1612
      %v1614 = vrcp.pop %v1472
      %v1615 = vmul.f32 %v1472, %v1614
      %v1616 = vsub.f32 1.0, %v1615
      %v1617 = vmul.f32 %v1614, %v1616
      %v1618 = vadd.f32 %v1614, %v1617
      %vm1619 = vweird.f32 %v1472
      %vm1620 = vweird.f32 %v1614
      %vm1621 = vmor %vm1619, %vm1620
      %v1622 = vsel %vm1621, %v1614, %v1618
      %v1623 = vand.u32 2147483647, %v1472
      %vm1624 = vcmp.eq.f32.partialorder %v1623, 8.507059e+37
      %v1625 = vand.u32 %v1472, 2147483648
      %v1626 = vor.u32 1.1754944e-38, %v1625
      %v1627 = vsel %vm1624, %v1626, %v1622
      %v1628 = vmul.f32 1.0, %v1627
      %v1629 = vrcp.pop %v1473
      %v1630 = vmul.f32 %v1473, %v1629
      %v1631 = vsub.f32 1.0, %v1630
      %v1632 = vmul.f32 %v1629, %v1631
      %v1633 = vadd.f32 %v1629, %v1632
      %vm1634 = vweird.f32 %v1473
      %vm1635 = vweird.f32 %v1629
      %vm1636 = vmor %vm1634, %vm1635
      %v1637 = vsel %vm1636, %v1629, %v1633
      %v1638 = vand.u32 2147483647, %v1473
      %vm1639 = vcmp.eq.f32.partialorder %v1638, 8.507059e+37
      %v1640 = vand.u32 %v1473, 2147483648
      %v1641 = vor.u32 1.1754944e-38, %v1640
      %v1642 = vsel %vm1639, %v1641, %v1637
      %v1643 = vmul.f32 1.0, %v1642
      %v1644 = vrcp.pop %v1474
      %v1645 = vmul.f32 %v1474, %v1644
      %v1646 = vsub.f32 1.0, %v1645
      %v1647 = vmul.f32 %v1644, %v1646
      %v1648 = vadd.f32 %v1644, %v1647
      %vm1649 = vweird.f32 %v1474
      %vm1650 = vweird.f32 %v1644
      %vm1651 = vmor %vm1649, %vm1650
      %v1652 = vsel %vm1651, %v1644, %v1648
      %v1653 = vand.u32 2147483647, %v1474
      %vm1654 = vcmp.eq.f32.partialorder %v1653, 8.507059e+37
      %v1655 = vand.u32 %v1474, 2147483648
      %v1656 = vor.u32 1.1754944e-38, %v1655
      %v1657 = vsel %vm1654, %v1656, %v1652
      %v1658 = vmul.f32 1.0, %v1657
      %v1659 = vrcp.pop %v1475
      %v1660 = vmul.f32 %v1475, %v1659
      %v1661 = vsub.f32 1.0, %v1660
      %v1662 = vmul.f32 %v1659, %v1661
      %v1663 = vadd.f32 %v1659, %v1662
      %vm1664 = vweird.f32 %v1475
      %vm1665 = vweird.f32 %v1659
      %vm1666 = vmor %vm1664, %vm1665
      %v1667 = vsel %vm1666, %v1659, %v1663
      %v1668 = vand.u32 2147483647, %v1475
      %vm1669 = vcmp.eq.f32.partialorder %v1668, 8.507059e+37
      %v1670 = vand.u32 %v1475, 2147483648
      %v1671 = vor.u32 1.1754944e-38, %v1670
      %v1672 = vsel %vm1669, %v1671, %v1667
      %v1673 = vmul.f32 1.0, %v1672
      %v1674 = vrcp.pop %v1476
      %v1675 = vmul.f32 %v1476, %v1674
      %v1676 = vsub.f32 1.0, %v1675
      %v1677 = vmul.f32 %v1674, %v1676
      %v1678 = vadd.f32 %v1674, %v1677
      %vm1679 = vweird.f32 %v1476
      %vm1680 = vweird.f32 %v1674
      %vm1681 = vmor %vm1679, %vm1680
      %v1682 = vsel %vm1681, %v1674, %v1678
      %v1683 = vand.u32 2147483647, %v1476
      %vm1684 = vcmp.eq.f32.partialorder %v1683, 8.507059e+37
      %v1685 = vand.u32 %v1476, 2147483648
      %v1686 = vor.u32 1.1754944e-38, %v1685
      %v1687 = vsel %vm1684, %v1686, %v1682
      %v1688 = vmul.f32 1.0, %v1687
      %v1689 = vrcp.pop %v1477
      %v1690 = vmul.f32 %v1477, %v1689
      %v1691 = vsub.f32 1.0, %v1690
      %v1692 = vmul.f32 %v1689, %v1691
      %v1693 = vadd.f32 %v1689, %v1692
      %vm1694 = vweird.f32 %v1477
      %vm1695 = vweird.f32 %v1689
      %vm1696 = vmor %vm1694, %vm1695
      %v1697 = vsel %vm1696, %v1689, %v1693
      %v1698 = vand.u32 2147483647, %v1477
      %vm1699 = vcmp.eq.f32.partialorder %v1698, 8.507059e+37
      %v1700 = vand.u32 %v1477, 2147483648
      %v1701 = vor.u32 1.1754944e-38, %v1700
      %v1702 = vsel %vm1699, %v1701, %v1697
      %v1703 = vmul.f32 1.0, %v1702
      %v1704 = vrcp.pop %v1478
      %v1705 = vmul.f32 %v1478, %v1704
      %v1706 = vsub.f32 1.0, %v1705
      %v1707 = vmul.f32 %v1704, %v1706
      %v1708 = vadd.f32 %v1704, %v1707
      %vm1709 = vweird.f32 %v1478
      %vm1710 = vweird.f32 %v1704
      %vm1711 = vmor %vm1709, %vm1710
      %v1712 = vsel %vm1711, %v1704, %v1708
      %v1713 = vand.u32 2147483647, %v1478
      %vm1714 = vcmp.eq.f32.partialorder %v1713, 8.507059e+37
      %v1715 = vand.u32 %v1478, 2147483648
      %v1716 = vor.u32 1.1754944e-38, %v1715
      %v1717 = vsel %vm1714, %v1716, %v1712
      %v1718 = vmul.f32 1.0, %v1717
      %v1719 = vmul.f32 %v1493, %v183
      %v1720 = vmul.f32 %v1508, %v184
      %v1721 = vmul.f32 %v1523, %v185
      %v1722 = vmul.f32 %v1538, %v186
      %v1723 = vmul.f32 %v1553, %v187
      %v1724 = vmul.f32 %v1568, %v188
      %v1725 = vmul.f32 %v1583, %v189
      %v1726 = vmul.f32 %v1598, %v190
      %v1727 = vmul.f32 %v1613, %v191
      %v1728 = vmul.f32 %v1628, %v192
      %v1729 = vmul.f32 %v1643, %v193
      %v1730 = vmul.f32 %v1658, %v194
      %v1731 = vmul.f32 %v1673, %v195
      %v1732 = vmul.f32 %v1688, %v196
      %v1733 = vmul.f32 %v1703, %v197
      %v1734 = vmul.f32 %v1718, %v198
      %v1735 = vadd.f32 %v1719, %v1727
      %v1736 = vadd.f32 %v1720, %v1728
      %v1737 = vadd.f32 %v1721, %v1729
      %v1738 = vadd.f32 %v1722, %v1730
      %v1739 = vadd.f32 %v1723, %v1731
      %v1740 = vadd.f32 %v1724, %v1732
      %v1741 = vadd.f32 %v1725, %v1733
      %v1742 = vadd.f32 %v1726, %v1734
      %v1743 = vadd.f32 %v1735, %v222
      %v1744 = vadd.f32 %v1736, %v222
      %v1745 = vadd.f32 %v1737, %v227
      %v1746 = vadd.f32 %v1738, %v227
      %v1747 = vadd.f32 %v1739, %v232
      %v1748 = vadd.f32 %v1740, %v232
      %v1749 = vadd.f32 %v1741, %v237
      %v1750 = vadd.f32 %v1742, %v237
      %v1751 = vmul.f32 %v1743, %v1743
      %v1752 = vmul.f32 %v1744, %v1744
      %v1753 = vmul.f32 %v1745, %v1745
      %v1754 = vmul.f32 %v1746, %v1746
      %v1755 = vmul.f32 %v1747, %v1747
      %v1756 = vmul.f32 %v1748, %v1748
      %v1757 = vmul.f32 %v1749, %v1749
      %v1758 = vmul.f32 %v1750, %v1750
      %v1759 = vrot.slane %v1751, 4
      %v1760 = vadd.f32 %v1751, %v1759
      %v1761 = vrot.slane %v1760, 2
      %v1762 = vadd.f32 %v1760, %v1761
      %v1763 = vrot.slane %v1762, 1
      %v1764 = vadd.f32 %v1762, %v1763
      %v1765 = vrot.slane %v1752, 4
      %v1766 = vadd.f32 %v1752, %v1765
      %v1767 = vrot.slane %v1766, 2
      %v1768 = vadd.f32 %v1766, %v1767
      %v1769 = vrot.slane %v1768, 1
      %v1770 = vadd.f32 %v1768, %v1769
      %v1771 = vrot.slane %v1753, 4
      %v1772 = vadd.f32 %v1753, %v1771
      %v1773 = vrot.slane %v1772, 2
      %v1774 = vadd.f32 %v1772, %v1773
      %v1775 = vrot.slane %v1774, 1
      %v1776 = vadd.f32 %v1774, %v1775
      %v1777 = vrot.slane %v1754, 4
      %v1778 = vadd.f32 %v1754, %v1777
      %v1779 = vrot.slane %v1778, 2
      %v1780 = vadd.f32 %v1778, %v1779
      %v1781 = vrot.slane %v1780, 1
      %v1782 = vadd.f32 %v1780, %v1781
      %v1783 = vrot.slane %v1755, 4
      %v1784 = vadd.f32 %v1755, %v1783
      %v1785 = vrot.slane %v1784, 2
      %v1786 = vadd.f32 %v1784, %v1785
      %v1787 = vrot.slane %v1786, 1
      %v1788 = vadd.f32 %v1786, %v1787
      %v1789 = vrot.slane %v1756, 4
      %v1790 = vadd.f32 %v1756, %v1789
      %v1791 = vrot.slane %v1790, 2
      %v1792 = vadd.f32 %v1790, %v1791
      %v1793 = vrot.slane %v1792, 1
      %v1794 = vadd.f32 %v1792, %v1793
      %v1795 = vrot.slane %v1757, 4
      %v1796 = vadd.f32 %v1757, %v1795
      %v1797 = vrot.slane %v1796, 2
      %v1798 = vadd.f32 %v1796, %v1797
      %v1799 = vrot.slane %v1798, 1
      %v1800 = vadd.f32 %v1798, %v1799
      %v1801 = vrot.slane %v1758, 4
      %v1802 = vadd.f32 %v1758, %v1801
      %v1803 = vrot.slane %v1802, 2
      %v1804 = vadd.f32 %v1802, %v1803
      %v1805 = vrot.slane %v1804, 1
      %v1806 = vadd.f32 %v1804, %v1805
      %v1807 = vadd.f32 %v1764, 1.0
      %v1808 = vadd.f32 %v1770, 1.0
      %v1809 = vadd.f32 %v1776, 1.0
      %v1810 = vadd.f32 %v1782, 1.0
      %v1811 = vadd.f32 %v1788, 1.0
      %v1812 = vadd.f32 %v1794, 1.0
      %v1813 = vadd.f32 %v1800, 1.0
      %v1814 = vadd.f32 %v1806, 1.0
      %v1815 = vrcp.pop %v1807
      %v1816 = vmul.f32 %v1807, %v1815
      %v1817 = vsub.f32 1.0, %v1816
      %v1818 = vmul.f32 %v1815, %v1817
      %v1819 = vadd.f32 %v1815, %v1818
      %vm1820 = vweird.f32 %v1807
      %vm1821 = vweird.f32 %v1815
      %vm1822 = vmor %vm1820, %vm1821
      %v1823 = vsel %vm1822, %v1815, %v1819
      %v1824 = vand.u32 2147483647, %v1807
      %vm1825 = vcmp.eq.f32.partialorder %v1824, 8.507059e+37
      %v1826 = vand.u32 %v1807, 2147483648
      %v1827 = vor.u32 1.1754944e-38, %v1826
      %v1828 = vsel %vm1825, %v1827, %v1823
      %v1829 = vmul.f32 %v1764, %v1828
      %v1830 = vrcp.pop %v1808
      %v1831 = vmul.f32 %v1808, %v1830
      %v1832 = vsub.f32 1.0, %v1831
      %v1833 = vmul.f32 %v1830, %v1832
      %v1834 = vadd.f32 %v1830, %v1833
      %vm1835 = vweird.f32 %v1808
      %vm1836 = vweird.f32 %v1830
      %vm1837 = vmor %vm1835, %vm1836
      %v1838 = vsel %vm1837, %v1830, %v1834
      %v1839 = vand.u32 2147483647, %v1808
      %vm1840 = vcmp.eq.f32.partialorder %v1839, 8.507059e+37
      %v1841 = vand.u32 %v1808, 2147483648
      %v1842 = vor.u32 1.1754944e-38, %v1841
      %v1843 = vsel %vm1840, %v1842, %v1838
      %v1844 = vmul.f32 %v1770, %v1843
      %v1845 = vrcp.pop %v1809
      %v1846 = vmul.f32 %v1809, %v1845
      %v1847 = vsub.f32 1.0, %v1846
      %v1848 = vmul.f32 %v1845, %v1847
      %v1849 = vadd.f32 %v1845, %v1848
      %vm1850 = vweird.f32 %v1809
      %vm1851 = vweird.f32 %v1845
      %vm1852 = vmor %vm1850, %vm1851
      %v1853 = vsel %vm1852, %v1845, %v1849
      %v1854 = vand.u32 2147483647, %v1809
      %vm1855 = vcmp.eq.f32.partialorder %v1854, 8.507059e+37
      %v1856 = vand.u32 %v1809, 2147483648
      %v1857 = vor.u32 1.1754944e-38, %v1856
      %v1858 = vsel %vm1855, %v1857, %v1853
      %v1859 = vmul.f32 %v1776, %v1858
      %v1860 = vrcp.pop %v1810
      %v1861 = vmul.f32 %v1810, %v1860
      %v1862 = vsub.f32 1.0, %v1861
      %v1863 = vmul.f32 %v1860, %v1862
      %v1864 = vadd.f32 %v1860, %v1863
      %vm1865 = vweird.f32 %v1810
      %vm1866 = vweird.f32 %v1860
      %vm1867 = vmor %vm1865, %vm1866
      %v1868 = vsel %vm1867, %v1860, %v1864
      %v1869 = vand.u32 2147483647, %v1810
      %vm1870 = vcmp.eq.f32.partialorder %v1869, 8.507059e+37
      %v1871 = vand.u32 %v1810, 2147483648
      %v1872 = vor.u32 1.1754944e-38, %v1871
      %v1873 = vsel %vm1870, %v1872, %v1868
      %v1874 = vmul.f32 %v1782, %v1873
      %v1875 = vrcp.pop %v1811
      %v1876 = vmul.f32 %v1811, %v1875
      %v1877 = vsub.f32 1.0, %v1876
      %v1878 = vmul.f32 %v1875, %v1877
      %v1879 = vadd.f32 %v1875, %v1878
      %vm1880 = vweird.f32 %v1811
      %vm1881 = vweird.f32 %v1875
      %vm1882 = vmor %vm1880, %vm1881
      %v1883 = vsel %vm1882, %v1875, %v1879
      %v1884 = vand.u32 2147483647, %v1811
      %vm1885 = vcmp.eq.f32.partialorder %v1884, 8.507059e+37
      %v1886 = vand.u32 %v1811, 2147483648
      %v1887 = vor.u32 1.1754944e-38, %v1886
      %v1888 = vsel %vm1885, %v1887, %v1883
      %v1889 = vmul.f32 %v1788, %v1888
      %v1890 = vrcp.pop %v1812
      %v1891 = vmul.f32 %v1812, %v1890
      %v1892 = vsub.f32 1.0, %v1891
      %v1893 = vmul.f32 %v1890, %v1892
      %v1894 = vadd.f32 %v1890, %v1893
      %vm1895 = vweird.f32 %v1812
      %vm1896 = vweird.f32 %v1890
      %vm1897 = vmor %vm1895, %vm1896
      %v1898 = vsel %vm1897, %v1890, %v1894
      %v1899 = vand.u32 2147483647, %v1812
      %vm1900 = vcmp.eq.f32.partialorder %v1899, 8.507059e+37
      %v1901 = vand.u32 %v1812, 2147483648
      %v1902 = vor.u32 1.1754944e-38, %v1901
      %v1903 = vsel %vm1900, %v1902, %v1898
      %v1904 = vmul.f32 %v1794, %v1903
      %v1905 = vrcp.pop %v1813
      %v1906 = vmul.f32 %v1813, %v1905
      %v1907 = vsub.f32 1.0, %v1906
      %v1908 = vmul.f32 %v1905, %v1907
      %v1909 = vadd.f32 %v1905, %v1908
      %vm1910 = vweird.f32 %v1813
      %vm1911 = vweird.f32 %v1905
      %vm1912 = vmor %vm1910, %vm1911
      %v1913 = vsel %vm1912, %v1905, %v1909
      %v1914 = vand.u32 2147483647, %v1813
      %vm1915 = vcmp.eq.f32.partialorder %v1914, 8.507059e+37
      %v1916 = vand.u32 %v1813, 2147483648
      %v1917 = vor.u32 1.1754944e-38, %v1916
      %v1918 = vsel %vm1915, %v1917, %v1913
      %v1919 = vmul.f32 %v1800, %v1918
      %v1920 = vrcp.pop %v1814
      %v1921 = vmul.f32 %v1814, %v1920
      %v1922 = vsub.f32 1.0, %v1921
      %v1923 = vmul.f32 %v1920, %v1922
      %v1924 = vadd.f32 %v1920, %v1923
      %vm1925 = vweird.f32 %v1814
      %vm1926 = vweird.f32 %v1920
      %vm1927 = vmor %vm1925, %vm1926
      %v1928 = vsel %vm1927, %v1920, %v1924
      %v1929 = vand.u32 2147483647, %v1814
      %vm1930 = vcmp.eq.f32.partialorder %v1929, 8.507059e+37
      %v1931 = vand.u32 %v1814, 2147483648
      %v1932 = vor.u32 1.1754944e-38, %v1931
      %v1933 = vsel %vm1930, %v1932, %v1928
      %v1934 = vmul.f32 %v1806, %v1933
      %v1935 = vmul.f32 %v1829, %v1743
      %v1936 = vmul.f32 %v1844, %v1744
      %v1937 = vmul.f32 %v1859, %v1745
      %v1938 = vmul.f32 %v1874, %v1746
      %v1939 = vmul.f32 %v1889, %v1747
      %v1940 = vmul.f32 %v1904, %v1748
      %v1941 = vmul.f32 %v1919, %v1749
      %v1942 = vmul.f32 %v1934, %v1750
      %v1943 = vadd.f32 %v1764, 1e-07
      %v1944 = vadd.f32 %v1770, 1e-07
      %v1945 = vadd.f32 %v1776, 1e-07
      %v1946 = vadd.f32 %v1782, 1e-07
      %v1947 = vadd.f32 %v1788, 1e-07
      %v1948 = vadd.f32 %v1794, 1e-07
      %v1949 = vadd.f32 %v1800, 1e-07
      %v1950 = vadd.f32 %v1806, 1e-07
      %v1951 = vrsqrt.pop %v1943
      %v1952 = vmul.f32 %v1951, %v1943
      %v1953 = vmul.f32 %v1952, %v1951
      %v1954 = vmul.f32 0.5, %v1953
      %v1955 = vsub.f32 1.5, %v1954
      %v1956 = vmul.f32 %v1951, %v1955
      %vm1957 = vweird.f32 %v1943
      %vm1958 = vweird.f32 %v1951
      %vm1959 = vmor %vm1957, %vm1958
      %v1960 = vsel %vm1959, %v1951, %v1956
      %v1961 = vrsqrt.pop %v1944
      %v1962 = vmul.f32 %v1961, %v1944
      %v1963 = vmul.f32 %v1962, %v1961
      %v1964 = vmul.f32 0.5, %v1963
      %v1965 = vsub.f32 1.5, %v1964
      %v1966 = vmul.f32 %v1961, %v1965
      %vm1967 = vweird.f32 %v1944
      %vm1968 = vweird.f32 %v1961
      %vm1969 = vmor %vm1967, %vm1968
      %v1970 = vsel %vm1969, %v1961, %v1966
      %v1971 = vrsqrt.pop %v1945
      %v1972 = vmul.f32 %v1971, %v1945
      %v1973 = vmul.f32 %v1972, %v1971
      %v1974 = vmul.f32 0.5, %v1973
      %v1975 = vsub.f32 1.5, %v1974
      %v1976 = vmul.f32 %v1971, %v1975
      %vm1977 = vweird.f32 %v1945
      %vm1978 = vweird.f32 %v1971
      %vm1979 = vmor %vm1977, %vm1978
      %v1980 = vsel %vm1979, %v1971, %v1976
      %v1981 = vrsqrt.pop %v1946
      %v1982 = vmul.f32 %v1981, %v1946
      %v1983 = vmul.f32 %v1982, %v1981
      %v1984 = vmul.f32 0.5, %v1983
      %v1985 = vsub.f32 1.5, %v1984
      %v1986 = vmul.f32 %v1981, %v1985
      %vm1987 = vweird.f32 %v1946
      %vm1988 = vweird.f32 %v1981
      %vm1989 = vmor %vm1987, %vm1988
      %v1990 = vsel %vm1989, %v1981, %v1986
      %v1991 = vrsqrt.pop %v1947
      %v1992 = vmul.f32 %v1991, %v1947
      %v1993 = vmul.f32 %v1992, %v1991
      %v1994 = vmul.f32 0.5, %v1993
      %v1995 = vsub.f32 1.5, %v1994
      %v1996 = vmul.f32 %v1991, %v1995
      %vm1997 = vweird.f32 %v1947
      %vm1998 = vweird.f32 %v1991
      %vm1999 = vmor %vm1997, %vm1998
      %v2000 = vsel %vm1999, %v1991, %v1996
      %v2001 = vrsqrt.pop %v1948
      %v2002 = vmul.f32 %v2001, %v1948
      %v2003 = vmul.f32 %v2002, %v2001
      %v2004 = vmul.f32 0.5, %v2003
      %v2005 = vsub.f32 1.5, %v2004
      %v2006 = vmul.f32 %v2001, %v2005
      %vm2007 = vweird.f32 %v1948
      %vm2008 = vweird.f32 %v2001
      %vm2009 = vmor %vm2007, %vm2008
      %v2010 = vsel %vm2009, %v2001, %v2006
      %v2011 = vrsqrt.pop %v1949
      %v2012 = vmul.f32 %v2011, %v1949
      %v2013 = vmul.f32 %v2012, %v2011
      %v2014 = vmul.f32 0.5, %v2013
      %v2015 = vsub.f32 1.5, %v2014
      %v2016 = vmul.f32 %v2011, %v2015
      %vm2017 = vweird.f32 %v1949
      %vm2018 = vweird.f32 %v2011
      %vm2019 = vmor %vm2017, %vm2018
      %v2020 = vsel %vm2019, %v2011, %v2016
      %v2021 = vrsqrt.pop %v1950
      %v2022 = vmul.f32 %v2021, %v1950
      %v2023 = vmul.f32 %v2022, %v2021
      %v2024 = vmul.f32 0.5, %v2023
      %v2025 = vsub.f32 1.5, %v2024
      %v2026 = vmul.f32 %v2021, %v2025
      %vm2027 = vweird.f32 %v1950
      %vm2028 = vweird.f32 %v2021
      %vm2029 = vmor %vm2027, %vm2028
      %v2030 = vsel %vm2029, %v2021, %v2026
      %v2031 = vmul.f32 %v1935, %v1960
      %v2032 = vmul.f32 %v1936, %v1970
      %v2033 = vmul.f32 %v1937, %v1980
      %v2034 = vmul.f32 %v1938, %v1990
      %v2035 = vmul.f32 %v1939, %v2000
      %v2036 = vmul.f32 %v1940, %v2010
      %v2037 = vmul.f32 %v1941, %v2020
      %v2038 = vmul.f32 %v1942, %v2030
      %2039 = vst [vmem:[%s181] sm:$0xff] %v2031
      %2040 = vst [vmem:[%s181 + $0x8] sm:$0xff] %v2032
      %2041 = vst [vmem:[%s181 + $0x10] sm:$0xff] %v2033
      %2042 = vst [vmem:[%s181 + $0x18] sm:$0xff] %v2034
      %2043 = vst [vmem:[%s181 + $0x20] sm:$0xff] %v2035
      %2044 = vst [vmem:[%s181 + $0x28] sm:$0xff] %v2036
      %2045 = vst [vmem:[%s181 + $0x30] sm:$0xff] %v2037
      %2046 = vst [vmem:[%s181 + $0x38] sm:$0xff] %v2038
      %s2047 = smul.u32 2, %s18
      %p2048 = scmp.lt.s32.totalorder %s17, 1
      %s2049 = scalar_select %p2048, %s17, 1
      %p2050 = scmp.lt.s32.totalorder %s2047, 1
      %s2051 = scalar_select %p2050, %s2047, 1
      %s2052 = smul.addr %s2049, 8
      %s2053 = sadd.s32 %s2051, %s2052
      %s2054 = smul.addr %s2053, 8
      %s2055 = scalar_lea.vmem %s2, %s2054
      // Predicated region
      $region29: #{a_call__.3} parent=27 // pred_check
        %p2056 = pneg %p94
      $region30: #{a_call__.3} parent=27 // pred_check_branch
        %2058 = sbr.rel (%p2056) target = $region32
      $region31: #{a_call__.3} parent=27 // pred_region
        %s2059 = smul.u32 2, %s18
      $region32: #{a_call__.3} parent=27 // pred_fallthru
        _
    $region28: #{a_call__.3} parent=5 // pred_fallthru
      _
    %p2060 = scmp.le.s32.totalorder 2, %s8
    // Predicated region
    $region33: #{a_call__.3} parent=5 // pred_check
      %p2061 = pneg %p2060
    $region34: #{a_call__.3} parent=5 // pred_check_branch
      %2063 = sbr.rel (%p2061) target = $region36
    $region35: #{a_call__.3} parent=5 // pred_region
      %s2064 = ssub.s32 %s8, 2
      // Predicated region
      $region37: #{a_call__.3} parent=35 // pred_check
        %p2065 = pneg %p100
      $region38: #{a_call__.3} parent=35 // pred_check_branch
        %2067 = sbr.rel (%p2065) target = $region40
      $region39: #{a_call__.3} parent=35 // pred_region
        %s2068 = smul.u32 2, %s20
        %p2069 = scmp.lt.s32.totalorder %s19, 1
        %s2070 = scalar_select %p2069, %s19, 1
        %p2071 = scmp.lt.s32.totalorder %s2068, 1
        %s2072 = scalar_select %p2071, %s2068, 1
        %s2073 = smul.addr %s2070, 8
        %s2074 = sadd.s32 %s2072, %s2073
        %s2075 = smul.addr %s2074, 8
        %s2076 = scalar_lea.vmem %s2, %s2075
      $region40: #{a_call__.3} parent=35 // pred_fallthru
        _
    $region36: #{a_call__.3} parent=5 // pred_fallthru
      _
  $region6: #{a_call__.3} parent=0 // loop_footer
    %s12 = sadd.s32 1, %s8
  $region7: #{a_call__.3} parent=0 // loop_footer_branch
    %7 = sbr.rel target = $region3
  $region8: #{a_call__.3} parent=0 // loop_exit
    _

// kernel: a_call__.2
$region0: #{a_call__.2}
  #allocation0 [shape = 'u32[]', space=smem, size = 0x4, offset = 0x4, fixed_abs, tag = 'smem constant byte address 0x4 - core index']
  #allocation1 [shape = 'u32[72,128]{1,0:T(1,128)}', space=vmem, size = 0x9000, scoped, tag = 'internal scratch']
  #allocation2 [shape = 'f32[64,256]{1,0:T(8,128)}', space=vmem, size = 0x10000, scoped, tag = 'scratch operand']
  %s0 = inlined_call_operand.vmem [shape: bf16[64,256], index: 0, kind: input, shape index: {}]
  %s1 = inlined_call_operand.vmem [shape: bf16[2,256,256], index: 1, kind: input, shape index: {}]
  %s2 = inlined_call_operand.vmem [shape: f32[2,64,256], index: 2, kind: output, shape index: {}]
  %s3 = sld [smem:[#allocation0]]
  $region49: #{a_call__.2} parent=0
    _
  %s5 = ssub.s32 1, %s3
  %s6 = scalar_select 0, %s5, %s3
  loop: start=0, step=1, limit=4
  $region2: #{a_call__.2} parent=0 // loop_pre_header
    _
  $region3: #{a_call__.2} parent=0 // loop_header
    %s8 = sphi 0, %s12
    %p9 = scmp.ge.s32.totalorder %s8, 4
    %s15 = sphi 0, %s41
    %s16 = sphi 0, %s37
    %s17 = sphi 0, %s33
    %s18 = sphi 0, %s29
    %s19 = sphi 0, %s15
    %s20 = sphi 0, %s16
    %s21 = sphi 0, %s17
    %s22 = sphi 0, %s18
    %s23 = sphi 0, %s19
    %s24 = sphi 0, %s20
    %s25 = sphi 0, %s21
    %s26 = sphi 0, %s22
    %s46 = sphi 0, %s48
    %s49 = sphi 0, %s46
    %s50 = sphi 0, %s49
    %s66 = sphi 0, %s50
    %s76 = sphi 0, %s78
    %s79 = sphi 0, %s76
    %s80 = sphi 0, %s79
    %s96 = sphi 0, %s80
    %s106 = sphi 0, %s108
    %s109 = sphi 0, %s106
    %s110 = sphi 0, %s109
    %s126 = sphi 0, %s110
  $region4: #{a_call__.2} parent=0 // loop_header_branch
    %11 = sbr.rel (%p9) target = $region8
  $region5: #{a_call__.2} parent=0 // loop_body
    %s13 = ssub.s32 %s8, 1
    %s14 = ssub.s32 %s8, 2
    %s27 = sadd.s32 1, %s18
    %p28 = scmp.ge.s32.totalorder %s27, 1
    %s29 = scalar_select %p28, 0, %s27
    %s30 = sadd.s32 1, %s17
    %s31 = scalar_select %p28, %s30, %s17
    %p32 = scmp.ge.s32.totalorder %s31, 1
    %s33 = scalar_select %p32, 0, %s31
    %s34 = sadd.s32 1, %s16
    %s35 = scalar_select %p32, %s34, %s16
    %p36 = scmp.ge.s32.totalorder %s35, 1
    %s37 = scalar_select %p36, 0, %s35
    %s38 = sadd.s32 1, %s15
    %s39 = scalar_select %p36, %s38, %s15
    %p40 = scmp.ge.s32.totalorder %s39, 2
    %s41 = scalar_select %p40, 0, %s39
    %s42 = ssub.s32 %s16, %s37
    %s43 = ssub.s32 %s18, %s29
    %s44 = sor.u32 %s42, %s43
    %p45 = scmp.eq.s32.totalorder %s44, 0
    %s47 = sadd.s32 %s46, 1
    %s48 = scalar_select %p45, %s46, %s47
    %p51 = pneg %p45
    %p52 = scmp.eq.s32.totalorder %s8, 1
    %p53 = por %p51, %p52
    %p54 = scmp.ne.s32.totalorder %s46, %s49
    %p55 = scmp.eq.s32.totalorder %s8, 0
    %p56 = por %p54, %p55
    %p57 = scmp.ne.s32.totalorder %s46, %s49
    %p58 = scmp.eq.s32.totalorder %s13, 1
    %p59 = por %p57, %p58
    %p60 = scmp.ne.s32.totalorder %s49, %s50
    %p61 = scmp.eq.s32.totalorder %s13, 0
    %p62 = por %p60, %p61
    %p63 = scmp.ne.s32.totalorder %s49, %s50
    %p64 = scmp.eq.s32.totalorder %s14, 1
    %p65 = por %p63, %p64
    %p67 = scmp.ne.s32.totalorder %s50, %s66
    %p68 = scmp.eq.s32.totalorder %s14, 0
    %p69 = por %p67, %p68
    %s70 = ssub.s32 %s15, %s41
    %s71 = ssub.s32 %s18, %s29
    %s72 = sor.u32 %s70, %s71
    %s73 = ssub.s32 %s17, %s33
    %s74 = sor.u32 %s72, %s73
    %p75 = scmp.eq.s32.totalorder %s74, 0
    %s77 = sadd.s32 %s76, 1
    %s78 = scalar_select %p75, %s76, %s77
    %p81 = pneg %p75
    %p82 = scmp.eq.s32.totalorder %s8, 1
    %p83 = por %p81, %p82
    %p84 = scmp.ne.s32.totalorder %s76, %s79
    %p85 = scmp.eq.s32.totalorder %s8, 0
    %p86 = por %p84, %p85
    %p87 = scmp.ne.s32.totalorder %s76, %s79
    %p88 = scmp.eq.s32.totalorder %s13, 1
    %p89 = por %p87, %p88
    %p90 = scmp.ne.s32.totalorder %s79, %s80
    %p91 = scmp.eq.s32.totalorder %s13, 0
    %p92 = por %p90, %p91
    %p93 = scmp.ne.s32.totalorder %s79, %s80
    %p94 = scmp.eq.s32.totalorder %s14, 1
    %p95 = por %p93, %p94
    %p97 = scmp.ne.s32.totalorder %s80, %s96
    %p98 = scmp.eq.s32.totalorder %s14, 0
    %p99 = por %p97, %p98
    %s100 = ssub.s32 %s15, %s41
    %s101 = ssub.s32 %s16, %s37
    %s102 = sor.u32 %s100, %s101
    %s103 = ssub.s32 %s17, %s33
    %s104 = sor.u32 %s102, %s103
    %p105 = scmp.eq.s32.totalorder %s104, 0
    %s107 = sadd.s32 %s106, 1
    %s108 = scalar_select %p105, %s106, %s107
    %p111 = pneg %p105
    %p112 = scmp.eq.s32.totalorder %s8, 1
    %p113 = por %p111, %p112
    %p114 = scmp.ne.s32.totalorder %s106, %s109
    %p115 = scmp.eq.s32.totalorder %s8, 0
    %p116 = por %p114, %p115
    %p117 = scmp.ne.s32.totalorder %s106, %s109
    %p118 = scmp.eq.s32.totalorder %s13, 1
    %p119 = por %p117, %p118
    %p120 = scmp.ne.s32.totalorder %s109, %s110
    %p121 = scmp.eq.s32.totalorder %s13, 0
    %p122 = por %p120, %p121
    %p123 = scmp.ne.s32.totalorder %s109, %s110
    %p124 = scmp.eq.s32.totalorder %s14, 1
    %p125 = por %p123, %p124
    %p127 = scmp.ne.s32.totalorder %s110, %s126
    %p128 = scmp.eq.s32.totalorder %s14, 0
    %p129 = por %p127, %p128
    %p130 = scmp.le.s32.totalorder 1, %s8
    %p131 = scmp.lt.s32.totalorder %s8, 3
    %p132 = pnand %p130, %p131
    %p133 = pneg %p132
    // Predicated region
    $region9: #{a_call__.2} parent=5 // pred_check
      _
    $region10: #{a_call__.2} parent=5 // pred_check_branch
      %135 = sbr.rel (%p132) target = $region12
    $region11: #{a_call__.2} parent=5 // pred_region
      %s136 = ssub.s32 %s8, 1
      // Predicated region
      $region13: #{a_call__.2} parent=11 // pred_check
        %p137 = pneg %p62
      $region14: #{a_call__.2} parent=11 // pred_check_branch
        %139 = sbr.rel (%p137) target = $region16
      $region15: #{a_call__.2} parent=11 // pred_region
        %s140 = smul.u32 8, %s20
        %s141 = smul.u32 2, %s22
        %p142 = scmp.lt.s32.totalorder %s140, 7
        %s143 = scalar_select %p142, %s140, 7
        %p144 = scmp.lt.s32.totalorder %s141, 1
        %s145 = scalar_select %p144, %s141, 1
        %s146 = smul.addr %s143, 2
        %s147 = sadd.s32 %s145, %s146
        %s148 = smul.addr %s147, 4
        %s149 = scalar_lea.vmem %s0, %s148
        %s150 = smul.u32 8, %s20
        %s151 = smul.u32 2, %s22
      $region16: #{a_call__.2} parent=11 // pred_fallthru
        _
    $region12: #{a_call__.2} parent=5 // pred_fallthru
      _
    %p152 = scmp.lt.s32.totalorder %s8, 2
    // Predicated region
    $region17: #{a_call__.2} parent=5 // pred_check
      %p153 = pneg %p152
    $region18: #{a_call__.2} parent=5 // pred_check_branch
      %155 = sbr.rel (%p153) target = $region20
    $region19: #{a_call__.2} parent=5 // pred_region
      // Predicated region
      $region21: #{a_call__.2} parent=19 // pred_check
        %p156 = pneg %p86
      $region22: #{a_call__.2} parent=19 // pred_check_branch
        %158 = sbr.rel (%p156) target = $region24
      $region23: #{a_call__.2} parent=19 // pred_region
        %s159 = smul.u32 32, %s18
        %s160 = smul.u32 2, %s17
        %p161 = scmp.lt.s32.totalorder %s15, 1
        %s162 = scalar_select %p161, %s15, 1
        %p163 = scmp.lt.s32.totalorder %s159, 31
        %s164 = scalar_select %p163, %s159, 31
        %p165 = scmp.lt.s32.totalorder %s160, 1
        %s166 = scalar_select %p165, %s160, 1
        %s167 = smul.addr %s164, 2
        %s168 = sadd.s32 %s166, %s167
        %s169 = smul.addr %s162, 64
        %s170 = sadd.s32 %s168, %s169
        %s171 = smul.addr %s170, 4
        %s172 = scalar_lea.vmem %s1, %s171
        %s173 = smul.u32 32, %s18
        %s174 = smul.u32 2, %s17
      $region24: #{a_call__.2} parent=19 // pred_fallthru
        _
    $region20: #{a_call__.2} parent=5 // pred_fallthru
      _
    %p175 = scmp.le.s32.totalorder 1, %s8
    %p176 = scmp.lt.s32.totalorder %s8, 3
    %p177 = pnand %p175, %p176
    %p178 = pneg %p177
    // Predicated region
    $region25: #{a_call__.2} parent=5 // pred_check
      _
    $region26: #{a_call__.2} parent=5 // pred_check_branch
      %180 = sbr.rel (%p177) target = $region28
    $region27: #{a_call__.2} parent=5 // pred_region
      %s181 = ssub.s32 %s8, 1
      %s182 = smul.u32 8, %s20
      %s183 = smul.u32 2, %s22
      %p184 = scmp.lt.s32.totalorder %s182, 7
      %s185 = scalar_select %p184, %s182, 7
      %p186 = scmp.lt.s32.totalorder %s183, 1
      %s187 = scalar_select %p186, %s183, 1
      %s188 = smul.addr %s185, 2
      %s189 = sadd.s32 %s187, %s188
      %s190 = smul.addr %s189, 4
      %s191 = scalar_lea.vmem %s0, %s190
      %p192 = pneg %p62
      %p193 = pneg %p59
      %s194 = smul.u32 32, %s22
      %s195 = smul.u32 2, %s21
      %p196 = scmp.lt.s32.totalorder %s19, 1
      %s197 = scalar_select %p196, %s19, 1
      %p198 = scmp.lt.s32.totalorder %s194, 31
      %s199 = scalar_select %p198, %s194, 31
      %p200 = scmp.lt.s32.totalorder %s195, 1
      %s201 = scalar_select %p200, %s195, 1
      %s202 = smul.addr %s199, 2
      %s203 = sadd.s32 %s201, %s202
      %s204 = smul.addr %s197, 64
      %s205 = sadd.s32 %s203, %s204
      %s206 = smul.addr %s205, 4
      %s207 = scalar_lea.vmem %s1, %s206
      %p208 = pneg %p92
      %p209 = pneg %p89
      %p210 = pneg %p122
      %p211 = pneg %p119
      %s212 = smul.u32 8, %s20
      %s213 = smul.u32 2, %s21
      %p214 = scmp.lt.s32.totalorder %s19, 1
      %s215 = scalar_select %p214, %s19, 1
      %p216 = scmp.lt.s32.totalorder %s212, 7
      %s217 = scalar_select %p216, %s212, 7
      %p218 = scmp.lt.s32.totalorder %s213, 1
      %s219 = scalar_select %p218, %s213, 1
      %s220 = smul.addr %s217, 2
      %s221 = sadd.s32 %s219, %s220
      %s222 = smul.addr %s215, 16
      %s223 = sadd.s32 %s221, %s222
      %s224 = smul.addr %s223, 8
      %s225 = scalar_lea.vmem %s2, %s224
      %s226 = smul.u32 8, %s20
      %s227 = smul.u32 2, %s22
      %p228 = scmp.lt.s32.totalorder %s226, 7
      %s229 = scalar_select %p228, %s226, 7
      %p230 = scmp.lt.s32.totalorder %s227, 1
      %s231 = scalar_select %p230, %s227, 1
      %s232 = smul.addr %s229, 2
      %s233 = sadd.s32 %s231, %s232
      %s234 = smul.addr %s233, 4
      %s235 = scalar_lea.vmem %s0, %s234
      %s236 = smul.u32 8, %s20
      %s237 = smul.u32 2, %s22
      %s238 = smul.u32 32, %s22
      %s239 = smul.u32 2, %s21
      %p240 = scmp.lt.s32.totalorder %s19, 1
      %s241 = scalar_select %p240, %s19, 1
      %p242 = scmp.lt.s32.totalorder %s238, 31
      %s243 = scalar_select %p242, %s238, 31
      %p244 = scmp.lt.s32.totalorder %s239, 1
      %s245 = scalar_select %p244, %s239, 1
      %s246 = smul.addr %s243, 2
      %s247 = sadd.s32 %s245, %s246
      %s248 = smul.addr %s241, 64
      %s249 = sadd.s32 %s247, %s248
      %s250 = smul.addr %s249, 4
      %s251 = scalar_lea.vmem %s1, %s250
      %s252 = smul.u32 32, %s22
      %s253 = smul.u32 2, %s21
      %s254 = smul.u32 8, %s20
      %s255 = smul.u32 2, %s21
      %p256 = scmp.lt.s32.totalorder %s19, 1
      %s257 = scalar_select %p256, %s19, 1
      %p258 = scmp.lt.s32.totalorder %s254, 7
      %s259 = scalar_select %p258, %s254, 7
      %p260 = scmp.lt.s32.totalorder %s255, 1
      %s261 = scalar_select %p260, %s255, 1
      %s262 = smul.addr %s259, 2
      %s263 = sadd.s32 %s261, %s262
      %s264 = smul.addr %s257, 16
      %s265 = sadd.s32 %s263, %s264
      %s266 = smul.addr %s265, 8
      %s267 = scalar_lea.vmem %s2, %s266
      %s268 = smul.u32 8, %s20
      %s269 = smul.u32 2, %s21
      %p270 = scmp.eq.s32.totalorder %s22, 0
      // Predicated region
      $region29: #{a_call__.2} parent=27 // pred_check
        %p271 = pneg %p270
      $region30: #{a_call__.2} parent=27 // pred_check_branch
        %273 = sbr.rel (%p271) target = $region32
      $region31: #{a_call__.2} parent=27 // pred_region
        %274 = vst [vmem:[#allocation2] sm:$0xff] 0.0
        %275 = vst [vmem:[#allocation2 + $0x8] sm:$0xff] 0.0
        %276 = vst [vmem:[#allocation2 + $0x10] sm:$0xff] 0.0
        %277 = vst [vmem:[#allocation2 + $0x18] sm:$0xff] 0.0
        %278 = vst [vmem:[#allocation2 + $0x20] sm:$0xff] 0.0
        %279 = vst [vmem:[#allocation2 + $0x28] sm:$0xff] 0.0
        %280 = vst [vmem:[#allocation2 + $0x30] sm:$0xff] 0.0
        %281 = vst [vmem:[#allocation2 + $0x38] sm:$0xff] 0.0
        %282 = vst [vmem:[#allocation2 + $0x40] sm:$0xff] 0.0
        %283 = vst [vmem:[#allocation2 + $0x48] sm:$0xff] 0.0
        %284 = vst [vmem:[#allocation2 + $0x50] sm:$0xff] 0.0
        %285 = vst [vmem:[#allocation2 + $0x58] sm:$0xff] 0.0
        %286 = vst [vmem:[#allocation2 + $0x60] sm:$0xff] 0.0
        %287 = vst [vmem:[#allocation2 + $0x68] sm:$0xff] 0.0
        %288 = vst [vmem:[#allocation2 + $0x70] sm:$0xff] 0.0
        %289 = vst [vmem:[#allocation2 + $0x78] sm:$0xff] 0.0
      $region32: #{a_call__.2} parent=27 // pred_fallthru
        _
      %v290 = vld [vmem:[#allocation2] sm:$0xff]
      %v291 = vld [vmem:[#allocation2 + $0x8] sm:$0xff]
      %v292 = vld [vmem:[#allocation2 + $0x10] sm:$0xff]
      %v293 = vld [vmem:[#allocation2 + $0x18] sm:$0xff]
      %v294 = vld [vmem:[#allocation2 + $0x20] sm:$0xff]
      %v295 = vld [vmem:[#allocation2 + $0x28] sm:$0xff]
      %v296 = vld [vmem:[#allocation2 + $0x30] sm:$0xff]
      %v297 = vld [vmem:[#allocation2 + $0x38] sm:$0xff]
      %v298 = vld [vmem:[#allocation2 + $0x40] sm:$0xff]
      %v299 = vld [vmem:[#allocation2 + $0x48] sm:$0xff]
      %v300 = vld [vmem:[#allocation2 + $0x50] sm:$0xff]
      %v301 = vld [vmem:[#allocation2 + $0x58] sm:$0xff]
      %v302 = vld [vmem:[#allocation2 + $0x60] sm:$0xff]
      %v303 = vld [vmem:[#allocation2 + $0x68] sm:$0xff]
      %v304 = vld [vmem:[#allocation2 + $0x70] sm:$0xff]
      %v305 = vld [vmem:[#allocation2 + $0x78] sm:$0xff]
      %v306 = vld [vmem:[%s235] sm:$0xff]
      %v307 = vld [vmem:[%s235 + $0x8] sm:$0xff]
      %v308 = vld [vmem:[%s235 + $0x10] sm:$0xff]
      %v309 = vld [vmem:[%s235 + $0x18] sm:$0xff]
      %v310 = vld [vmem:[%s235 + $0x20] sm:$0xff]
      %v311 = vld [vmem:[%s235 + $0x28] sm:$0xff]
      %v312 = vld [vmem:[%s235 + $0x30] sm:$0xff]
      %v313 = vld [vmem:[%s235 + $0x38] sm:$0xff]
      %v314 = vld [vmem:[%s251] sm:$0xff]
      %v315 = vld [vmem:[%s251 + $0x8] sm:$0xff]
      %v316 = vld [vmem:[%s251 + $0x10] sm:$0xff]
      %v317 = vld [vmem:[%s251 + $0x18] sm:$0xff]
      %v318 = vld [vmem:[%s251 + $0x20] sm:$0xff]
      %v319 = vld [vmem:[%s251 + $0x28] sm:$0xff]
      %v320 = vld [vmem:[%s251 + $0x30] sm:$0xff]
      %v321 = vld [vmem:[%s251 + $0x38] sm:$0xff]
      %v322 = vld [vmem:[%s251 + $0x40] sm:$0xff]
      %v323 = vld [vmem:[%s251 + $0x48] sm:$0xff]
      %v324 = vld [vmem:[%s251 + $0x50] sm:$0xff]
      %v325 = vld [vmem:[%s251 + $0x58] sm:$0xff]
      %v326 = vld [vmem:[%s251 + $0x60] sm:$0xff]
      %v327 = vld [vmem:[%s251 + $0x68] sm:$0xff]
      %v328 = vld [vmem:[%s251 + $0x70] sm:$0xff]
      %v329 = vld [vmem:[%s251 + $0x78] sm:$0xff]
      %v330 = vld [vmem:[%s251 + $0x80] sm:$0xff]
      %v331 = vld [vmem:[%s251 + $0x88] sm:$0xff]
      %v332 = vld [vmem:[%s251 + $0x90] sm:$0xff]
      %v333 = vld [vmem:[%s251 + $0x98] sm:$0xff]
      %v334 = vld [vmem:[%s251 + $0xa0] sm:$0xff]
      %v335 = vld [vmem:[%s251 + $0xa8] sm:$0xff]
      %v336 = vld [vmem:[%s251 + $0xb0] sm:$0xff]
      %v337 = vld [vmem:[%s251 + $0xb8] sm:$0xff]
      %v338 = vld [vmem:[%s251 + $0xc0] sm:$0xff]
      %v339 = vld [vmem:[%s251 + $0xc8] sm:$0xff]
      %v340 = vld [vmem:[%s251 + $0xd0] sm:$0xff]
      %v341 = vld [vmem:[%s251 + $0xd8] sm:$0xff]
      %v342 = vld [vmem:[%s251 + $0xe0] sm:$0xff]
      %v343 = vld [vmem:[%s251 + $0xe8] sm:$0xff]
      %v344 = vld [vmem:[%s251 + $0xf0] sm:$0xff]
      %v345 = vld [vmem:[%s251 + $0xf8] sm:$0xff]
      %v354 = vunpack.c.l.b16 %v306
      %v355 = vunpack.c.h.b16 %v306
      %v356 = vunpack.c.l.b16 %v307
      %v357 = vunpack.c.h.b16 %v307
      %v358 = vunpack.c.l.b16 %v308
      %v359 = vunpack.c.h.b16 %v308
      %v360 = vunpack.c.l.b16 %v309
      %v361 = vunpack.c.h.b16 %v309
      %v362 = vunpack.c.l.b16 %v310
      %v363 = vunpack.c.h.b16 %v310
      %v364 = vunpack.c.l.b16 %v311
      %v365 = vunpack.c.h.b16 %v311
      %v366 = vunpack.c.l.b16 %v312
      %v367 = vunpack.c.h.b16 %v312
      %v368 = vunpack.c.l.b16 %v313
      %v369 = vunpack.c.h.b16 %v313
      %v370 = vpack.c.b16 %v356, %v354
      %v371 = vpack.c.b16 %v357, %v355
      %v372 = vpack.c.b16 %v360, %v358
      %v373 = vpack.c.b16 %v361, %v359
      %v374 = vpack.c.b16 %v364, %v362
      %v375 = vpack.c.b16 %v365, %v363
      %v376 = vpack.c.b16 %v368, %v366
      %v377 = vpack.c.b16 %v369, %v367
      %v418 = vunpack.c.l.b16 %v314
      %v419 = vunpack.c.h.b16 %v314
      %v420 = vunpack.c.l.b16 %v315
      %v421 = vunpack.c.h.b16 %v315
      %v422 = vunpack.c.l.b16 %v316
      %v423 = vunpack.c.h.b16 %v316
      %v424 = vunpack.c.l.b16 %v317
      %v425 = vunpack.c.h.b16 %v317
      %v426 = vunpack.c.l.b16 %v318
      %v427 = vunpack.c.h.b16 %v318
      %v428 = vunpack.c.l.b16 %v319
      %v429 = vunpack.c.h.b16 %v319
      %v430 = vunpack.c.l.b16 %v320
      %v431 = vunpack.c.h.b16 %v320
      %v432 = vunpack.c.l.b16 %v321
      %v433 = vunpack.c.h.b16 %v321
      %v434 = vunpack.c.l.b16 %v322
      %v435 = vunpack.c.h.b16 %v322
      %v436 = vunpack.c.l.b16 %v323
      %v437 = vunpack.c.h.b16 %v323
      %v438 = vunpack.c.l.b16 %v324
      %v439 = vunpack.c.h.b16 %v324
      %v440 = vunpack.c.l.b16 %v325
      %v441 = vunpack.c.h.b16 %v325
      %v442 = vunpack.c.l.b16 %v326
      %v443 = vunpack.c.h.b16 %v326
      %v444 = vunpack.c.l.b16 %v327
      %v445 = vunpack.c.h.b16 %v327
      %v446 = vunpack.c.l.b16 %v328
      %v447 = vunpack.c.h.b16 %v328
      %v448 = vunpack.c.l.b16 %v329
      %v449 = vunpack.c.h.b16 %v329
      %v450 = vunpack.c.l.b16 %v330
      %v451 = vunpack.c.h.b16 %v330
      %v452 = vunpack.c.l.b16 %v331
      %v453 = vunpack.c.h.b16 %v331
      %v454 = vunpack.c.l.b16 %v332
      %v455 = vunpack.c.h.b16 %v332
      %v456 = vunpack.c.l.b16 %v333
      %v457 = vunpack.c.h.b16 %v333
      %v458 = vunpack.c.l.b16 %v334
      %v459 = vunpack.c.h.b16 %v334
      %v460 = vunpack.c.l.b16 %v335
      %v461 = vunpack.c.h.b16 %v335
      %v462 = vunpack.c.l.b16 %v336
      %v463 = vunpack.c.h.b16 %v336
      %v464 = vunpack.c.l.b16 %v337
      %v465 = vunpack.c.h.b16 %v337
      %v466 = vunpack.c.l.b16 %v338
      %v467 = vunpack.c.h.b16 %v338
      %v468 = vunpack.c.l.b16 %v339
      %v469 = vunpack.c.h.b16 %v339
      %v470 = vunpack.c.l.b16 %v340
      %v471 = vunpack.c.h.b16 %v340
      %v472 = vunpack.c.l.b16 %v341
      %v473 = vunpack.c.h.b16 %v341
      %v474 = vunpack.c.l.b16 %v342
      %v475 = vunpack.c.h.b16 %v342
      %v476 = vunpack.c.l.b16 %v343
      %v477 = vunpack.c.h.b16 %v343
      %v478 = vunpack.c.l.b16 %v344
      %v479 = vunpack.c.h.b16 %v344
      %v480 = vunpack.c.l.b16 %v345
      %v481 = vunpack.c.h.b16 %v345
      %v482 = vpack.c.b16 %v420, %v418
      %v483 = vpack.c.b16 %v421, %v419
      %v484 = vpack.c.b16 %v424, %v422
      %v485 = vpack.c.b16 %v425, %v423
      %v486 = vpack.c.b16 %v428, %v426
      %v487 = vpack.c.b16 %v429, %v427
      %v488 = vpack.c.b16 %v432, %v430
      %v489 = vpack.c.b16 %v433, %v431
      %v490 = vpack.c.b16 %v436, %v434
      %v491 = vpack.c.b16 %v437, %v435
      %v492 = vpack.c.b16 %v440, %v438
      %v493 = vpack.c.b16 %v441, %v439
      %v494 = vpack.c.b16 %v444, %v442
      %v495 = vpack.c.b16 %v445, %v443
      %v496 = vpack.c.b16 %v448, %v446
      %v497 = vpack.c.b16 %v449, %v447
      %v498 = vpack.c.b16 %v452, %v450
      %v499 = vpack.c.b16 %v453, %v451
      %v500 = vpack.c.b16 %v456, %v454
      %v501 = vpack.c.b16 %v457, %v455
      %v502 = vpack.c.b16 %v460, %v458
      %v503 = vpack.c.b16 %v461, %v459
      %v504 = vpack.c.b16 %v464, %v462
      %v505 = vpack.c.b16 %v465, %v463
      %v506 = vpack.c.b16 %v468, %v466
      %v507 = vpack.c.b16 %v469, %v467
      %v508 = vpack.c.b16 %v472, %v470
      %v509 = vpack.c.b16 %v473, %v471
      %v510 = vpack.c.b16 %v476, %v474
      %v511 = vpack.c.b16 %v477, %v475
      %v512 = vpack.c.b16 %v480, %v478
      %v513 = vpack.c.b16 %v481, %v479
      %546 = vmatpush.bf16.msra.mxu0 %v496
      %547 = vmatpush.bf16.msra.mxu0 %v494
      %548 = vmatpush.bf16.msra.mxu0 %v492
      %549 = vmatpush.bf16.msra.mxu0 %v490
      %550 = vmatpush.bf16.msra.mxu0 %v488
      %551 = vmatpush.bf16.msra.mxu0 %v486
      %552 = vmatpush.bf16.msra.mxu0 %v484
      %553 = vmatpush.bf16.msra.mxu0 %v482
      %554 = vmatmul.bf16.gmra.mxu0 %v370
      %v555 = vpop.f32.mrf.mxu0
      %v556 = vadd.f32 0.0, %v555
      %v557 = vpop.f32.mrf.mxu0
      %v558 = vadd.f32 0.0, %v557
      %559 = vmatmul.bf16.gmra.mxu0 %v372
      %v560 = vpop.f32.mrf.mxu0
      %v561 = vadd.f32 0.0, %v560
      %v562 = vpop.f32.mrf.mxu0
      %v563 = vadd.f32 0.0, %v562
      %564 = vmatmul.bf16.gmra.mxu0 %v374
      %v565 = vpop.f32.mrf.mxu0
      %v566 = vadd.f32 0.0, %v565
      %v567 = vpop.f32.mrf.mxu0
      %v568 = vadd.f32 0.0, %v567
      %569 = vmatmul.bf16.gmra.mxu0 %v376
      %v570 = vpop.f32.mrf.mxu0
      %v571 = vadd.f32 0.0, %v570
      %v572 = vpop.f32.mrf.mxu0
      %v573 = vadd.f32 0.0, %v572
      %574 = vdwg.mxu0
      %575 = vmatpush.bf16.msra.mxu0 %v512
      %576 = vmatpush.bf16.msra.mxu0 %v510
      %577 = vmatpush.bf16.msra.mxu0 %v508
      %578 = vmatpush.bf16.msra.mxu0 %v506
      %579 = vmatpush.bf16.msra.mxu0 %v504
      %580 = vmatpush.bf16.msra.mxu0 %v502
      %581 = vmatpush.bf16.msra.mxu0 %v500
      %582 = vmatpush.bf16.msra.mxu0 %v498
      %583 = vmatmul.bf16.gmra.mxu0 %v371
      %v584 = vpop.f32.mrf.mxu0
      %v585 = vadd.f32 %v556, %v584
      %v586 = vpop.f32.mrf.mxu0
      %v587 = vadd.f32 %v558, %v586
      %588 = vmatmul.bf16.gmra.mxu0 %v373
      %v589 = vpop.f32.mrf.mxu0
      %v590 = vadd.f32 %v561, %v589
      %v591 = vpop.f32.mrf.mxu0
      %v592 = vadd.f32 %v563, %v591
      %593 = vmatmul.bf16.gmra.mxu0 %v375
      %v594 = vpop.f32.mrf.mxu0
      %v595 = vadd.f32 %v566, %v594
      %v596 = vpop.f32.mrf.mxu0
      %v597 = vadd.f32 %v568, %v596
      %598 = vmatmul.bf16.gmra.mxu0 %v377
      %v599 = vpop.f32.mrf.mxu0
      %v600 = vadd.f32 %v571, %v599
      %v601 = vpop.f32.mrf.mxu0
      %v602 = vadd.f32 %v573, %v601
      %603 = vdwg.mxu0
      %604 = vmatpush.bf16.msra.mxu0 %v497
      %605 = vmatpush.bf16.msra.mxu0 %v495
      %606 = vmatpush.bf16.msra.mxu0 %v493
      %607 = vmatpush.bf16.msra.mxu0 %v491
      %608 = vmatpush.bf16.msra.mxu0 %v489
      %609 = vmatpush.bf16.msra.mxu0 %v487
      %610 = vmatpush.bf16.msra.mxu0 %v485
      %611 = vmatpush.bf16.msra.mxu0 %v483
      %612 = vmatmul.bf16.gmra.mxu0 %v370
      %v613 = vpop.f32.mrf.mxu0
      %v614 = vadd.f32 0.0, %v613
      %v615 = vpop.f32.mrf.mxu0
      %v616 = vadd.f32 0.0, %v615
      %617 = vmatmul.bf16.gmra.mxu0 %v372
      %v618 = vpop.f32.mrf.mxu0
      %v619 = vadd.f32 0.0, %v618
      %v620 = vpop.f32.mrf.mxu0
      %v621 = vadd.f32 0.0, %v620
      %622 = vmatmul.bf16.gmra.mxu0 %v374
      %v623 = vpop.f32.mrf.mxu0
      %v624 = vadd.f32 0.0, %v623
      %v625 = vpop.f32.mrf.mxu0
      %v626 = vadd.f32 0.0, %v625
      %627 = vmatmul.bf16.gmra.mxu0 %v376
      %v628 = vpop.f32.mrf.mxu0
      %v629 = vadd.f32 0.0, %v628
      %v630 = vpop.f32.mrf.mxu0
      %v631 = vadd.f32 0.0, %v630
      %632 = vdwg.mxu0
      %633 = vmatpush.bf16.msra.mxu0 %v513
      %634 = vmatpush.bf16.msra.mxu0 %v511
      %635 = vmatpush.bf16.msra.mxu0 %v509
      %636 = vmatpush.bf16.msra.mxu0 %v507
      %637 = vmatpush.bf16.msra.mxu0 %v505
      %638 = vmatpush.bf16.msra.mxu0 %v503
      %639 = vmatpush.bf16.msra.mxu0 %v501
      %640 = vmatpush.bf16.msra.mxu0 %v499
      %641 = vmatmul.bf16.gmra.mxu0 %v371
      %v642 = vpop.f32.mrf.mxu0
      %v643 = vadd.f32 %v614, %v642
      %v644 = vpop.f32.mrf.mxu0
      %v645 = vadd.f32 %v616, %v644
      %646 = vmatmul.bf16.gmra.mxu0 %v373
      %v647 = vpop.f32.mrf.mxu0
      %v648 = vadd.f32 %v619, %v647
      %v649 = vpop.f32.mrf.mxu0
      %v650 = vadd.f32 %v621, %v649
      %651 = vmatmul.bf16.gmra.mxu0 %v375
      %v652 = vpop.f32.mrf.mxu0
      %v653 = vadd.f32 %v624, %v652
      %v654 = vpop.f32.mrf.mxu0
      %v655 = vadd.f32 %v626, %v654
      %656 = vmatmul.bf16.gmra.mxu0 %v377
      %v657 = vpop.f32.mrf.mxu0
      %v658 = vadd.f32 %v629, %v657
      %v659 = vpop.f32.mrf.mxu0
      %v660 = vadd.f32 %v631, %v659
      %661 = vdwg.mxu0
      %v662 = vadd.f32 %v290, %v585
      %v663 = vadd.f32 %v291, %v643
      %v664 = vadd.f32 %v292, %v587
      %v665 = vadd.f32 %v293, %v645
      %v666 = vadd.f32 %v294, %v590
      %v667 = vadd.f32 %v295, %v648
      %v668 = vadd.f32 %v296, %v592
      %v669 = vadd.f32 %v297, %v650
      %v670 = vadd.f32 %v298, %v595
      %v671 = vadd.f32 %v299, %v653
      %v672 = vadd.f32 %v300, %v597
      %v673 = vadd.f32 %v301, %v655
      %v674 = vadd.f32 %v302, %v600
      %v675 = vadd.f32 %v303, %v658
      %v676 = vadd.f32 %v304, %v602
      %v677 = vadd.f32 %v305, %v660
      %678 = vst [vmem:[#allocation2] sm:$0xff] %v662
      %679 = vst [vmem:[#allocation2 + $0x8] sm:$0xff] %v663
      %680 = vst [vmem:[#allocation2 + $0x10] sm:$0xff] %v664
      %681 = vst [vmem:[#allocation2 + $0x18] sm:$0xff] %v665
      %682 = vst [vmem:[#allocation2 + $0x20] sm:$0xff] %v666
      %683 = vst [vmem:[#allocation2 + $0x28] sm:$0xff] %v667
      %684 = vst [vmem:[#allocation2 + $0x30] sm:$0xff] %v668
      %685 = vst [vmem:[#allocation2 + $0x38] sm:$0xff] %v669
      %686 = vst [vmem:[#allocation2 + $0x40] sm:$0xff] %v670
      %687 = vst [vmem:[#allocation2 + $0x48] sm:$0xff] %v671
      %688 = vst [vmem:[#allocation2 + $0x50] sm:$0xff] %v672
      %689 = vst [vmem:[#allocation2 + $0x58] sm:$0xff] %v673
      %690 = vst [vmem:[#allocation2 + $0x60] sm:$0xff] %v674
      %691 = vst [vmem:[#allocation2 + $0x68] sm:$0xff] %v675
      %692 = vst [vmem:[#allocation2 + $0x70] sm:$0xff] %v676
      %693 = vst [vmem:[#allocation2 + $0x78] sm:$0xff] %v677
      // Predicated region
      $region33: #{a_call__.2} parent=27 // pred_check
        %p694 = pneg %p270
      $region34: #{a_call__.2} parent=27 // pred_check_branch
        %696 = sbr.rel (%p694) target = $region36
      $region35: #{a_call__.2} parent=27 // pred_region
        %v697 = vld [vmem:[#allocation2] sm:$0xff]
        %v698 = vld [vmem:[#allocation2 + $0x8] sm:$0xff]
        %v699 = vld [vmem:[#allocation2 + $0x10] sm:$0xff]
        %v700 = vld [vmem:[#allocation2 + $0x18] sm:$0xff]
        %v701 = vld [vmem:[#allocation2 + $0x20] sm:$0xff]
        %v702 = vld [vmem:[#allocation2 + $0x28] sm:$0xff]
        %v703 = vld [vmem:[#allocation2 + $0x30] sm:$0xff]
        %v704 = vld [vmem:[#allocation2 + $0x38] sm:$0xff]
        %v705 = vld [vmem:[#allocation2 + $0x40] sm:$0xff]
        %v706 = vld [vmem:[#allocation2 + $0x48] sm:$0xff]
        %v707 = vld [vmem:[#allocation2 + $0x50] sm:$0xff]
        %v708 = vld [vmem:[#allocation2 + $0x58] sm:$0xff]
        %v709 = vld [vmem:[#allocation2 + $0x60] sm:$0xff]
        %v710 = vld [vmem:[#allocation2 + $0x68] sm:$0xff]
        %v711 = vld [vmem:[#allocation2 + $0x70] sm:$0xff]
        %v712 = vld [vmem:[#allocation2 + $0x78] sm:$0xff]
        %713 = vst [vmem:[%s267] sm:$0xff] %v697
        %714 = vst [vmem:[%s267 + $0x8] sm:$0xff] %v698
        %715 = vst [vmem:[%s267 + $0x10] sm:$0xff] %v699
        %716 = vst [vmem:[%s267 + $0x18] sm:$0xff] %v700
        %717 = vst [vmem:[%s267 + $0x20] sm:$0xff] %v701
        %718 = vst [vmem:[%s267 + $0x28] sm:$0xff] %v702
        %719 = vst [vmem:[%s267 + $0x30] sm:$0xff] %v703
        %720 = vst [vmem:[%s267 + $0x38] sm:$0xff] %v704
        %721 = vst [vmem:[%s267 + $0x40] sm:$0xff] %v705
        %722 = vst [vmem:[%s267 + $0x48] sm:$0xff] %v706
        %723 = vst [vmem:[%s267 + $0x50] sm:$0xff] %v707
        %724 = vst [vmem:[%s267 + $0x58] sm:$0xff] %v708
        %725 = vst [vmem:[%s267 + $0x60] sm:$0xff] %v709
        %726 = vst [vmem:[%s267 + $0x68] sm:$0xff] %v710
        %727 = vst [vmem:[%s267 + $0x70] sm:$0xff] %v711
        %728 = vst [vmem:[%s267 + $0x78] sm:$0xff] %v712
      $region36: #{a_call__.2} parent=27 // pred_fallthru
        _
      %s729 = smul.u32 8, %s20
      %s730 = smul.u32 2, %s21
      %p731 = scmp.lt.s32.totalorder %s19, 1
      %s732 = scalar_select %p731, %s19, 1
      %p733 = scmp.lt.s32.totalorder %s729, 7
      %s734 = scalar_select %p733, %s729, 7
      %p735 = scmp.lt.s32.totalorder %s730, 1
      %s736 = scalar_select %p735, %s730, 1
      %s737 = smul.addr %s734, 2
      %s738 = sadd.s32 %s736, %s737
      %s739 = smul.addr %s732, 16
      %s740 = sadd.s32 %s738, %s739
      %s741 = smul.addr %s740, 8
      %s742 = scalar_lea.vmem %s2, %s741
      // Predicated region
      $region37: #{a_call__.2} parent=27 // pred_check
        %p743 = pneg %p119
      $region38: #{a_call__.2} parent=27 // pred_check_branch
        %745 = sbr.rel (%p743) target = $region40
      $region39: #{a_call__.2} parent=27 // pred_region
        %s746 = smul.u32 8, %s20
        %s747 = smul.u32 2, %s21
      $region40: #{a_call__.2} parent=27 // pred_fallthru
        _
    $region28: #{a_call__.2} parent=5 // pred_fallthru
      _
    %p748 = scmp.le.s32.totalorder 2, %s8
    // Predicated region
    $region41: #{a_call__.2} parent=5 // pred_check
      %p749 = pneg %p748
    $region42: #{a_call__.2} parent=5 // pred_check_branch
      %751 = sbr.rel (%p749) target = $region44
    $region43: #{a_call__.2} parent=5 // pred_region
      %s752 = ssub.s32 %s8, 2
      // Predicated region
      $region45: #{a_call__.2} parent=43 // pred_check
        %p753 = pneg %p125
      $region46: #{a_call__.2} parent=43 // pred_check_branch
        %755 = sbr.rel (%p753) target = $region48
      $region47: #{a_call__.2} parent=43 // pred_region
        %s756 = smul.u32 8, %s24
        %s757 = smul.u32 2, %s25
        %p758 = scmp.lt.s32.totalorder %s23, 1
        %s759 = scalar_select %p758, %s23, 1
        %p760 = scmp.lt.s32.totalorder %s756, 7
        %s761 = scalar_select %p760, %s756, 7
        %p762 = scmp.lt.s32.totalorder %s757, 1
        %s763 = scalar_select %p762, %s757, 1
        %s764 = smul.addr %s761, 2
        %s765 = sadd.s32 %s763, %s764
        %s766 = smul.addr %s759, 16
        %s767 = sadd.s32 %s765, %s766
        %s768 = smul.addr %s767, 8
        %s769 = scalar_lea.vmem %s2, %s768
      $region48: #{a_call__.2} parent=43 // pred_fallthru
        _
    $region44: #{a_call__.2} parent=5 // pred_fallthru
      _
  $region6: #{a_call__.2} parent=0 // loop_footer
    %s12 = sadd.s32 1, %s8
  $region7: #{a_call__.2} parent=0 // loop_footer_branch
    %7 = sbr.rel target = $region3
  $region8: #{a_call__.2} parent=0 // loop_exit
    _

</llo_original>
